<compile_context>
chip_gen: v5e
topology: v5e:2x2
jax: 0.10.0
libtpu: 0.0.40
codegen_flags: <defaults>
</compile_context>

<pallas_src>
import math

import jax
import jax.numpy as jnp
from jax import lax
from jax.experimental import pallas as pl
from jax.experimental.pallas import tpu as pltpu

# ----------------------------- model config ---------------------------------
VOCAB      = 100
TYPE_VOCAB = 2
MAX_LEN    = 8          # "max_length" of TransformerRLN
HIDDEN     = 32
N_HEADS    = 2
HEAD_DIM   = HIDDEN // N_HEADS
FFN        = 64
N_LAYERS   = 2
LN_EPS     = 1e-12      # BERT layernorm eps


# ----------------------------- in-kernel helpers -----------------------------
def _layernorm(x, gamma_beta):
    """layernorm(x) * gamma + beta, reduction over lanes. gamma_beta: (2, H)."""
    gamma = gamma_beta[0:1, :]
    beta = gamma_beta[1:2, :]
    mu = jnp.mean(x, axis=-1, keepdims=True)
    xc = x - mu
    var = jnp.mean(xc * xc, axis=-1, keepdims=True)
    return xc * lax.rsqrt(var + LN_EPS) * gamma + beta


def _gelu(x):
    # TODO(synk): HF BERT default is the exact erf GELU; tanh approximation ("gelu_new")
    # kept here for EUP-friendly lowering.
    c = math.sqrt(2.0 / math.pi)
    return 0.5 * x * (1.0 + jnp.tanh(c * (x + 0.044715 * x * x * x)))


# ----------------------------- fused forward kernel --------------------------
def _bert_fused_kernel(emb_ref, mask_ref, emb_ln_ref,
                       wqkv_ref, bqkv_ref, wo3_ref, bo_ref, ln1_ref,
                       w1_ref, b1_ref, w2_ref, b2_ref, ln2_ref,
                       pool_w_ref, pool_b_ref,
                       out_ref):
    # One grid step == one batch element (grid axis is "parallel").
    h = _layernorm(emb_ref[0], emb_ln_ref[...])            # (S, H)
    bias = (1.0 - mask_ref[0]) * (-10000.0)                # (1, S) additive key mask

    for l in range(N_LAYERS):
        # Fused QKV: one (S,H)@(H,3H) MXU pass; 1/sqrt(head_dim) already folded into Q.
        qkv = jnp.dot(h, wqkv_ref[l], preferred_element_type=jnp.float32) + bqkv_ref[l]

        # Heads stay as lane slices of the 96-wide QKV output; the per-head output
        # projection is accumulated in registers so the context never touches VMEM.
        attn = bo_ref[l]                                   # (1, H), broadcasts over rows
        for nh in range(N_HEADS):
            c0 = nh * HEAD_DIM
            qh = qkv[:, c0:c0 + HEAD_DIM]                              # (S, dh)
            kh = qkv[:, HIDDEN + c0:HIDDEN + c0 + HEAD_DIM]            # (S, dh)
            vh = qkv[:, 2 * HIDDEN + c0:2 * HIDDEN + c0 + HEAD_DIM]    # (S, dh)

            # scores: contract dh of q and k directly (no explicit kh.T / XLU transpose)
            s = lax.dot_general(qh, kh, (((1,), (1,)), ((), ())),
                                preferred_element_type=jnp.float32) + bias     # (S, S)
            s = s - jnp.max(s, axis=-1, keepdims=True)
            p = jnp.exp(s)
            p = p * pl.reciprocal(jnp.sum(p, axis=-1, keepdims=True), approx=True)
            ctx = jnp.dot(p, vh, preferred_element_type=jnp.float32)           # (S, dh)
            # fold the output projection per head: (S,dh)@(dh,H)
            attn = attn + jnp.dot(ctx, wo3_ref[l, nh],
                                  preferred_element_type=jnp.float32)

        h = _layernorm(attn + h, ln1_ref[l])

        ff = jnp.dot(h, w1_ref[l], preferred_element_type=jnp.float32) + b1_ref[l]
        ff = _gelu(ff)
        ff = jnp.dot(ff, w2_ref[l], preferred_element_type=jnp.float32) + b2_ref[l]
        h = _layernorm(ff + h, ln2_ref[l])

    # Pooler on the CLS row only: (1,H)@(H,H) + tanh, single contiguous store.
    cls = h[0:1, :]
    pooled = jnp.tanh(jnp.dot(cls, pool_w_ref[...], preferred_element_type=jnp.float32)
                      + pool_b_ref[...])
    out_ref[0] = pooled


# ----------------------------- parameter init -------------------------------
def init_params(key):
    def nrm(k, shape, scale=0.02):
        return scale * jax.random.normal(k, shape, dtype=jnp.float32)

    keys = jax.random.split(key, 8 + N_LAYERS)
    params = {
        "word_emb": nrm(keys[0], (VOCAB, HIDDEN)),
        "pos_emb":  nrm(keys[1], (MAX_LEN, HIDDEN)),
        "type_emb": nrm(keys[2], (TYPE_VOCAB, HIDDEN)),
        "emb_ln_g": jnp.ones((HIDDEN,), jnp.float32),
        "emb_ln_b": jnp.zeros((HIDDEN,), jnp.float32),
        "pool_w":   nrm(keys[3], (HIDDEN, HIDDEN)),
        "pool_b":   jnp.zeros((HIDDEN,), jnp.float32),
        "layers":   [],
    }
    for l in range(N_LAYERS):
        lk = jax.random.split(keys[8 + l], 6)
        params["layers"].append({
            "wq": nrm(lk[0], (HIDDEN, HIDDEN)), "bq": jnp.zeros((HIDDEN,), jnp.float32),
            "wk": nrm(lk[1], (HIDDEN, HIDDEN)), "bk": jnp.zeros((HIDDEN,), jnp.float32),
            "wv": nrm(lk[2], (HIDDEN, HIDDEN)), "bv": jnp.zeros((HIDDEN,), jnp.float32),
            "wo": nrm(lk[3], (HIDDEN, HIDDEN)), "bo": jnp.zeros((HIDDEN,), jnp.float32),
            "ln1_g": jnp.ones((HIDDEN,), jnp.float32), "ln1_b": jnp.zeros((HIDDEN,), jnp.float32),
            "w1": nrm(lk[4], (HIDDEN, FFN)),    "b1": jnp.zeros((FFN,), jnp.float32),
            "w2": nrm(lk[5], (FFN, HIDDEN)),    "b2": jnp.zeros((HIDDEN,), jnp.float32),
            "ln2_g": jnp.ones((HIDDEN,), jnp.float32), "ln2_b": jnp.zeros((HIDDEN,), jnp.float32),
        })
    return params


def prepare_params(params):
    """One-time weight packing (hoisted out of the per-call hot path).

    Folds the 1/sqrt(head_dim) attention scale into the Q projection and reshapes the
    output projection into per-head (dh, H) blocks so the kernel can accumulate it
    head-by-head without a VMEM context scratch.
    """
    L = params["layers"]
    scale = 1.0 / math.sqrt(HEAD_DIM)
    packed = {
        "word_emb": params["word_emb"],
        "pos_emb":  params["pos_emb"],
        "type_emb": params["type_emb"],
        "emb_ln":   jnp.stack([params["emb_ln_g"], params["emb_ln_b"]]),            # (2,H)
        "pool_w":   params["pool_w"],                                               # (H,H)
        "pool_b":   params["pool_b"][None, :],                                      # (1,H)
        "wqkv": jnp.stack([jnp.concatenate([l["wq"] * scale, l["wk"], l["wv"]], axis=1)
                           for l in L]),                                            # (L,H,3H)
        "bqkv": jnp.stack([jnp.concatenate([l["bq"] * scale, l["bk"], l["bv"]])[None, :]
                           for l in L]),                                            # (L,1,3H)
        "wo3":  jnp.stack([l["wo"].reshape(N_HEADS, HEAD_DIM, HIDDEN) for l in L]), # (L,NH,dh,H)
        "bo":   jnp.stack([l["bo"][None, :] for l in L]),                           # (L,1,H)
        "ln1":  jnp.stack([jnp.stack([l["ln1_g"], l["ln1_b"]]) for l in L]),        # (L,2,H)
        "w1":   jnp.stack([l["w1"] for l in L]),                                    # (L,H,FFN)
        "b1":   jnp.stack([l["b1"][None, :] for l in L]),                           # (L,1,FFN)
        "w2":   jnp.stack([l["w2"] for l in L]),                                    # (L,FFN,H)
        "b2":   jnp.stack([l["b2"][None, :] for l in L]),                           # (L,1,H)
        "ln2":  jnp.stack([jnp.stack([l["ln2_g"], l["ln2_b"]]) for l in L]),        # (L,2,H)
    }
    return packed


# ----------------------------- forward (glue) -------------------------------
def transformer_rln_forward(packed, input_ids, attention_mask):
    """Equivalent of `_, out = self.encoder(input_ids, attention_mask)`; returns pooled out."""
    B, S = input_ids.shape
    H = HIDDEN

    # Embedding gathers are data-dependent XLA glue; everything downstream is one kernel.
    we = jnp.take(packed["word_emb"], input_ids, axis=0)                  # (B,S,H)
    pe = packed["pos_emb"][None, :S, :]                                   # (1,S,H)
    te = packed["type_emb"][0][None, None, :]                             # token_type_ids == 0
    emb = (we + pe + te).astype(jnp.float32)                              # (B,S,H)
    mask = attention_mask.astype(jnp.float32).reshape(B, 1, S)            # (B,1,S)

    def rep(shape):  # full-array block, same copy for every grid step
        return pl.BlockSpec(shape, lambda b, n=len(shape): (0,) * n)

    pooled = pl.pallas_call(
        _bert_fused_kernel,
        out_shape=jax.ShapeDtypeStruct((B, 1, H), jnp.float32),
        grid=(B,),
        in_specs=[
            pl.BlockSpec((1, S, H), lambda b: (b, 0, 0)),      # embeddings, per batch element
            pl.BlockSpec((1, 1, S), lambda b: (b, 0, 0)),      # attention mask, per batch element
            rep(packed["emb_ln"].shape),
            rep(packed["wqkv"].shape),
            rep(packed["bqkv"].shape),
            rep(packed["wo3"].shape),
            rep(packed["bo"].shape),
            rep(packed["ln1"].shape),
            rep(packed["w1"].shape),
            rep(packed["b1"].shape),
            rep(packed["w2"].shape),
            rep(packed["b2"].shape),
            rep(packed["ln2"].shape),
            rep(packed["pool_w"].shape),
            rep(packed["pool_b"].shape),
        ],
        out_specs=pl.BlockSpec((1, 1, H), lambda b: (b, 0, 0)),
        compiler_params=pltpu.CompilerParams(dimension_semantics=("parallel",)),
    )(emb, mask, packed["emb_ln"], packed["wqkv"], packed["bqkv"], packed["wo3"],
      packed["bo"], packed["ln1"], packed["w1"], packed["b1"], packed["w2"],
      packed["b2"], packed["ln2"], packed["pool_w"], packed["pool_b"])

    return pooled.reshape(B, H)                                           # (B,H)


# TODO(synk): tokenizer (`encode_text`) and pretrained HF weight loading have no
# Pallas equivalent; integer ids are passed in directly with synthetic weights.

# ----------------------------- main ------------------------------------------
if __name__ == "__main__":
    key = jax.random.PRNGKey(0)
    pkey, ikey = jax.random.split(key)

    params = init_params(pkey)
    packed = prepare_params(params)   # one-time packing, outside the hot path

    B, S = 2, MAX_LEN
    input_ids = jax.random.randint(ikey, (B, S), 0, VOCAB, dtype=jnp.int32)
    # second sequence padded on its last 3 positions
    attention_mask = jnp.array(
        [[1] * S,
         [1] * (S - 3) + [0] * 3], dtype=jnp.int32)

    fwd = jax.jit(transformer_rln_forward)
    out = fwd(packed, input_ids, attention_mask)
    out = jax.block_until_ready(out)
    assert out.shape == (B, HIDDEN)
    assert bool(jnp.all(jnp.isfinite(out)))
    print("KERNEL_OK")
</pallas_src>

<mosaic_0001>
module attributes {stable_mosaic.version = 11 : i64} {
  func.func @_bert_fused_kernel(%arg0: i32, %arg1: memref<1x8x32xf32, #tpu.memory_space<vmem>>, %arg2: memref<1x1x8xf32, #tpu.memory_space<vmem>>, %arg3: memref<2x32xf32, #tpu.memory_space<vmem>>, %arg4: memref<2x32x96xf32, #tpu.memory_space<vmem>>, %arg5: memref<2x1x96xf32, #tpu.memory_space<vmem>>, %arg6: memref<2x2x16x32xf32, #tpu.memory_space<vmem>>, %arg7: memref<2x1x32xf32, #tpu.memory_space<vmem>>, %arg8: memref<2x2x32xf32, #tpu.memory_space<vmem>>, %arg9: memref<2x32x64xf32, #tpu.memory_space<vmem>>, %arg10: memref<2x1x64xf32, #tpu.memory_space<vmem>>, %arg11: memref<2x64x32xf32, #tpu.memory_space<vmem>>, %arg12: memref<2x1x32xf32, #tpu.memory_space<vmem>>, %arg13: memref<2x2x32xf32, #tpu.memory_space<vmem>>, %arg14: memref<32x32xf32, #tpu.memory_space<vmem>>, %arg15: memref<1x32xf32, #tpu.memory_space<vmem>>, %arg16: memref<1x1x32xf32, #tpu.memory_space<vmem>>) attributes {dimension_semantics = [#tpu.dimension_semantics<parallel>], iteration_bounds = array<i64: 2>, scalar_prefetch = 0 : i64, scratch_operands = 0 : i64, tpu.core_type = #tpu.core_type<tc>, window_params = [{transform_indices = @transform_0, window_bounds = array<i64: 1, 8, 32>}, {transform_indices = @transform_1, window_bounds = array<i64: 1, 1, 8>}, {pipeline_mode = #tpu.pipeline_mode<synchronous>, transform_indices = @transform_2, window_bounds = array<i64: 2, 32>}, {pipeline_mode = #tpu.pipeline_mode<synchronous>, transform_indices = @transform_3, window_bounds = array<i64: 2, 32, 96>}, {pipeline_mode = #tpu.pipeline_mode<synchronous>, transform_indices = @transform_4, window_bounds = array<i64: 2, 1, 96>}, {pipeline_mode = #tpu.pipeline_mode<synchronous>, transform_indices = @transform_5, window_bounds = array<i64: 2, 2, 16, 32>}, {pipeline_mode = #tpu.pipeline_mode<synchronous>, transform_indices = @transform_6, window_bounds = array<i64: 2, 1, 32>}, {pipeline_mode = #tpu.pipeline_mode<synchronous>, transform_indices = @transform_7, window_bounds = array<i64: 2, 2, 32>}, {pipeline_mode = #tpu.pipeline_mode<synchronous>, transform_indices = @transform_8, window_bounds = array<i64: 2, 32, 64>}, {pipeline_mode = #tpu.pipeline_mode<synchronous>, transform_indices = @transform_9, window_bounds = array<i64: 2, 1, 64>}, {pipeline_mode = #tpu.pipeline_mode<synchronous>, transform_indices = @transform_10, window_bounds = array<i64: 2, 64, 32>}, {pipeline_mode = #tpu.pipeline_mode<synchronous>, transform_indices = @transform_11, window_bounds = array<i64: 2, 1, 32>}, {pipeline_mode = #tpu.pipeline_mode<synchronous>, transform_indices = @transform_12, window_bounds = array<i64: 2, 2, 32>}, {pipeline_mode = #tpu.pipeline_mode<synchronous>, transform_indices = @transform_13, window_bounds = array<i64: 32, 32>}, {pipeline_mode = #tpu.pipeline_mode<synchronous>, transform_indices = @transform_14, window_bounds = array<i64: 1, 32>}, {transform_indices = @transform_15, window_bounds = array<i64: 1, 1, 32>}]} {
    %c0 = arith.constant 0 : index
    %c0_0 = arith.constant 0 : index
    %c0_1 = arith.constant 0 : index
    %0 = vector.load %arg1[%c0, %c0_0, %c0_1] : memref<1x8x32xf32, #tpu.memory_space<vmem>>, vector<1x8x32xf32>
    %1 = vector.shape_cast %0 : vector<1x8x32xf32> to vector<8x32xf32>
    %c0_2 = arith.constant 0 : index
    %c0_3 = arith.constant 0 : index
    %2 = vector.load %arg3[%c0_2, %c0_3] : memref<2x32xf32, #tpu.memory_space<vmem>>, vector<2x32xf32>
    %3 = vector.extract_strided_slice %2 {offsets = [0, 0], sizes = [1, 32], strides = [1, 1]} : vector<2x32xf32> to vector<1x32xf32>
    %4 = vector.extract_strided_slice %2 {offsets = [1, 0], sizes = [1, 32], strides = [1, 1]} : vector<2x32xf32> to vector<1x32xf32>
    %cst = arith.constant dense<0.000000e+00> : vector<8xf32>
    %5 = vector.multi_reduction <add>, %1, %cst [1] : vector<8x32xf32> to vector<8xf32>
    %6 = vector.shape_cast %5 : vector<8xf32> to vector<8x1xf32>
    %cst_4 = arith.constant 3.200000e+01 : f32
    %7 = vector.broadcast %cst_4 : f32 to vector<8x1xf32>
    %8 = arith.divf %6, %7 : vector<8x1xf32>
    %9 = vector.broadcast %8 : vector<8x1xf32> to vector<8x32xf32>
    %10 = arith.subf %1, %9 : vector<8x32xf32>
    %11 = arith.mulf %10, %10 : vector<8x32xf32>
    %cst_5 = arith.constant dense<0.000000e+00> : vector<8xf32>
    %12 = vector.multi_reduction <add>, %11, %cst_5 [1] : vector<8x32xf32> to vector<8xf32>
    %13 = vector.shape_cast %12 : vector<8xf32> to vector<8x1xf32>
    %cst_6 = arith.constant 3.200000e+01 : f32
    %14 = vector.broadcast %cst_6 : f32 to vector<8x1xf32>
    %15 = arith.divf %13, %14 : vector<8x1xf32>
    %cst_7 = arith.constant 9.99999996E-13 : f32
    %16 = vector.broadcast %cst_7 : f32 to vector<8x1xf32>
    %17 = arith.addf %15, %16 : vector<8x1xf32>
    %18 = math.rsqrt %17 : vector<8x1xf32>
    %19 = vector.broadcast %18 : vector<8x1xf32> to vector<8x32xf32>
    %20 = arith.mulf %10, %19 : vector<8x32xf32>
    %21 = vector.broadcast %3 : vector<1x32xf32> to vector<8x32xf32>
    %22 = arith.mulf %20, %21 : vector<8x32xf32>
    %23 = vector.broadcast %4 : vector<1x32xf32> to vector<8x32xf32>
    %24 = arith.addf %22, %23 : vector<8x32xf32>
    %c0_8 = arith.constant 0 : index
    %c0_9 = arith.constant 0 : index
    %c0_10 = arith.constant 0 : index
    %25 = vector.load %arg2[%c0_8, %c0_9, %c0_10] : memref<1x1x8xf32, #tpu.memory_space<vmem>>, vector<1x1x8xf32>
    %26 = vector.shape_cast %25 : vector<1x1x8xf32> to vector<1x8xf32>
    %cst_11 = arith.constant 1.000000e+00 : f32
    %27 = vector.broadcast %cst_11 : f32 to vector<1x8xf32>
    %28 = arith.subf %27, %26 : vector<1x8xf32>
    %cst_12 = arith.constant -1.000000e+04 : f32
    %29 = vector.broadcast %cst_12 : f32 to vector<1x8xf32>
    %30 = arith.mulf %28, %29 : vector<1x8xf32>
    %c0_13 = arith.constant 0 : index
    %c0_14 = arith.constant 0 : index
    %c0_15 = arith.constant 0 : index
    %31 = vector.load %arg4[%c0_13, %c0_14, %c0_15] : memref<2x32x96xf32, #tpu.memory_space<vmem>>, vector<1x32x96xf32>
    %32 = vector.shape_cast %31 : vector<1x32x96xf32> to vector<32x96xf32>
    %cst_16 = arith.constant dense<0.000000e+00> : vector<8x96xf32>
    %33 = tpu.matmul %24, %32, %cst_16 {dimension_numbers = #tpu.dot_dimension_numbers<[1], [0], [0], [1], [0, 0, 1, 1], [], []>} : vector<8x32xf32>, vector<32x96xf32>, vector<8x96xf32> -> vector<8x96xf32>
    %c0_17 = arith.constant 0 : index
    %c0_18 = arith.constant 0 : index
    %c0_19 = arith.constant 0 : index
    %34 = vector.load %arg5[%c0_17, %c0_18, %c0_19] : memref<2x1x96xf32, #tpu.memory_space<vmem>>, vector<1x1x96xf32>
    %35 = vector.shape_cast %34 : vector<1x1x96xf32> to vector<1x96xf32>
    %36 = vector.broadcast %35 : vector<1x96xf32> to vector<8x96xf32>
    %37 = arith.addf %33, %36 : vector<8x96xf32>
    %c0_20 = arith.constant 0 : index
    %c0_21 = arith.constant 0 : index
    %c0_22 = arith.constant 0 : index
    %38 = vector.load %arg7[%c0_20, %c0_21, %c0_22] : memref<2x1x32xf32, #tpu.memory_space<vmem>>, vector<1x1x32xf32>
    %39 = vector.shape_cast %38 : vector<1x1x32xf32> to vector<1x32xf32>
    %40 = vector.extract_strided_slice %37 {offsets = [0, 0], sizes = [8, 16], strides = [1, 1]} : vector<8x96xf32> to vector<8x16xf32>
    %41 = vector.extract_strided_slice %37 {offsets = [0, 32], sizes = [8, 16], strides = [1, 1]} : vector<8x96xf32> to vector<8x16xf32>
    %42 = vector.extract_strided_slice %37 {offsets = [0, 64], sizes = [8, 16], strides = [1, 1]} : vector<8x96xf32> to vector<8x16xf32>
    %cst_23 = arith.constant dense<0.000000e+00> : vector<8x8xf32>
    %43 = tpu.matmul %40, %41, %cst_23 {dimension_numbers = #tpu.dot_dimension_numbers<[1], [1], [0], [0], [0, 0, 1, 0], [], []>} : vector<8x16xf32>, vector<8x16xf32>, vector<8x8xf32> -> vector<8x8xf32>
    %44 = vector.broadcast %30 : vector<1x8xf32> to vector<8x8xf32>
    %45 = arith.addf %43, %44 : vector<8x8xf32>
    %cst_24 = arith.constant dense<0xFF800000> : vector<8xf32>
    %46 = vector.multi_reduction <maximumf>, %45, %cst_24 [1] : vector<8x8xf32> to vector<8xf32>
    %47 = vector.shape_cast %46 : vector<8xf32> to vector<8x1xf32>
    %48 = vector.broadcast %47 : vector<8x1xf32> to vector<8x8xf32>
    %49 = arith.subf %45, %48 : vector<8x8xf32>
    %50 = math.exp %49 : vector<8x8xf32>
    %cst_25 = arith.constant dense<0.000000e+00> : vector<8xf32>
    %51 = vector.multi_reduction <add>, %50, %cst_25 [1] : vector<8x8xf32> to vector<8xf32>
    %52 = vector.shape_cast %51 : vector<8xf32> to vector<8x1xf32>
    %53 = tpu.reciprocal %52 {approx = true} : vector<8x1xf32> -> vector<8x1xf32>
    %54 = vector.broadcast %53 : vector<8x1xf32> to vector<8x8xf32>
    %55 = arith.mulf %50, %54 : vector<8x8xf32>
    %cst_26 = arith.constant dense<0.000000e+00> : vector<8x16xf32>
    %56 = tpu.matmul %55, %42, %cst_26 {dimension_numbers = #tpu.dot_dimension_numbers<[1], [0], [0], [1], [0, 0, 1, 1], [], []>} : vector<8x8xf32>, vector<8x16xf32>, vector<8x16xf32> -> vector<8x16xf32>
    %c0_27 = arith.constant 0 : index
    %c0_28 = arith.constant 0 : index
    %c0_29 = arith.constant 0 : index
    %c0_30 = arith.constant 0 : index
    %57 = vector.load %arg6[%c0_27, %c0_28, %c0_29, %c0_30] : memref<2x2x16x32xf32, #tpu.memory_space<vmem>>, vector<1x1x16x32xf32>
    %58 = vector.shape_cast %57 : vector<1x1x16x32xf32> to vector<16x32xf32>
    %cst_31 = arith.constant dense<0.000000e+00> : vector<8x32xf32>
    %59 = tpu.matmul %56, %58, %cst_31 {dimension_numbers = #tpu.dot_dimension_numbers<[1], [0], [0], [1], [0, 0, 1, 1], [], []>} : vector<8x16xf32>, vector<16x32xf32>, vector<8x32xf32> -> vector<8x32xf32>
    %60 = vector.broadcast %39 : vector<1x32xf32> to vector<8x32xf32>
    %61 = arith.addf %60, %59 : vector<8x32xf32>
    %62 = vector.extract_strided_slice %37 {offsets = [0, 16], sizes = [8, 16], strides = [1, 1]} : vector<8x96xf32> to vector<8x16xf32>
    %63 = vector.extract_strided_slice %37 {offsets = [0, 48], sizes = [8, 16], strides = [1, 1]} : vector<8x96xf32> to vector<8x16xf32>
    %64 = vector.extract_strided_slice %37 {offsets = [0, 80], sizes = [8, 16], strides = [1, 1]} : vector<8x96xf32> to vector<8x16xf32>
    %cst_32 = arith.constant dense<0.000000e+00> : vector<8x8xf32>
    %65 = tpu.matmul %62, %63, %cst_32 {dimension_numbers = #tpu.dot_dimension_numbers<[1], [1], [0], [0], [0, 0, 1, 0], [], []>} : vector<8x16xf32>, vector<8x16xf32>, vector<8x8xf32> -> vector<8x8xf32>
    %66 = vector.broadcast %30 : vector<1x8xf32> to vector<8x8xf32>
    %67 = arith.addf %65, %66 : vector<8x8xf32>
    %cst_33 = arith.constant dense<0xFF800000> : vector<8xf32>
    %68 = vector.multi_reduction <maximumf>, %67, %cst_33 [1] : vector<8x8xf32> to vector<8xf32>
    %69 = vector.shape_cast %68 : vector<8xf32> to vector<8x1xf32>
    %70 = vector.broadcast %69 : vector<8x1xf32> to vector<8x8xf32>
    %71 = arith.subf %67, %70 : vector<8x8xf32>
    %72 = math.exp %71 : vector<8x8xf32>
    %cst_34 = arith.constant dense<0.000000e+00> : vector<8xf32>
    %73 = vector.multi_reduction <add>, %72, %cst_34 [1] : vector<8x8xf32> to vector<8xf32>
    %74 = vector.shape_cast %73 : vector<8xf32> to vector<8x1xf32>
    %75 = tpu.reciprocal %74 {approx = true} : vector<8x1xf32> -> vector<8x1xf32>
    %76 = vector.broadcast %75 : vector<8x1xf32> to vector<8x8xf32>
    %77 = arith.mulf %72, %76 : vector<8x8xf32>
    %cst_35 = arith.constant dense<0.000000e+00> : vector<8x16xf32>
    %78 = tpu.matmul %77, %64, %cst_35 {dimension_numbers = #tpu.dot_dimension_numbers<[1], [0], [0], [1], [0, 0, 1, 1], [], []>} : vector<8x8xf32>, vector<8x16xf32>, vector<8x16xf32> -> vector<8x16xf32>
    %c0_36 = arith.constant 0 : index
    %c1 = arith.constant 1 : index
    %c0_37 = arith.constant 0 : index
    %c0_38 = arith.constant 0 : index
    %79 = vector.load %arg6[%c0_36, %c1, %c0_37, %c0_38] : memref<2x2x16x32xf32, #tpu.memory_space<vmem>>, vector<1x1x16x32xf32>
    %80 = vector.shape_cast %79 : vector<1x1x16x32xf32> to vector<16x32xf32>
    %cst_39 = arith.constant dense<0.000000e+00> : vector<8x32xf32>
    %81 = tpu.matmul %78, %80, %cst_39 {dimension_numbers = #tpu.dot_dimension_numbers<[1], [0], [0], [1], [0, 0, 1, 1], [], []>} : vector<8x16xf32>, vector<16x32xf32>, vector<8x32xf32> -> vector<8x32xf32>
    %82 = arith.addf %61, %81 : vector<8x32xf32>
    %83 = arith.addf %82, %24 : vector<8x32xf32>
    %c0_40 = arith.constant 0 : index
    %c0_41 = arith.constant 0 : index
    %c0_42 = arith.constant 0 : index
    %84 = vector.load %arg8[%c0_40, %c0_41, %c0_42] : memref<2x2x32xf32, #tpu.memory_space<vmem>>, vector<1x2x32xf32>
    %85 = vector.shape_cast %84 : vector<1x2x32xf32> to vector<2x32xf32>
    %86 = vector.extract_strided_slice %85 {offsets = [0, 0], sizes = [1, 32], strides = [1, 1]} : vector<2x32xf32> to vector<1x32xf32>
    %87 = vector.extract_strided_slice %85 {offsets = [1, 0], sizes = [1, 32], strides = [1, 1]} : vector<2x32xf32> to vector<1x32xf32>
    %cst_43 = arith.constant dense<0.000000e+00> : vector<8xf32>
    %88 = vector.multi_reduction <add>, %83, %cst_43 [1] : vector<8x32xf32> to vector<8xf32>
    %89 = vector.shape_cast %88 : vector<8xf32> to vector<8x1xf32>
    %cst_44 = arith.constant 3.200000e+01 : f32
    %90 = vector.broadcast %cst_44 : f32 to vector<8x1xf32>
    %91 = arith.divf %89, %90 : vector<8x1xf32>
    %92 = vector.broadcast %91 : vector<8x1xf32> to vector<8x32xf32>
    %93 = arith.subf %83, %92 : vector<8x32xf32>
    %94 = arith.mulf %93, %93 : vector<8x32xf32>
    %cst_45 = arith.constant dense<0.000000e+00> : vector<8xf32>
    %95 = vector.multi_reduction <add>, %94, %cst_45 [1] : vector<8x32xf32> to vector<8xf32>
    %96 = vector.shape_cast %95 : vector<8xf32> to vector<8x1xf32>
    %cst_46 = arith.constant 3.200000e+01 : f32
    %97 = vector.broadcast %cst_46 : f32 to vector<8x1xf32>
    %98 = arith.divf %96, %97 : vector<8x1xf32>
    %cst_47 = arith.constant 9.99999996E-13 : f32
    %99 = vector.broadcast %cst_47 : f32 to vector<8x1xf32>
    %100 = arith.addf %98, %99 : vector<8x1xf32>
    %101 = math.rsqrt %100 : vector<8x1xf32>
    %102 = vector.broadcast %101 : vector<8x1xf32> to vector<8x32xf32>
    %103 = arith.mulf %93, %102 : vector<8x32xf32>
    %104 = vector.broadcast %86 : vector<1x32xf32> to vector<8x32xf32>
    %105 = arith.mulf %103, %104 : vector<8x32xf32>
    %106 = vector.broadcast %87 : vector<1x32xf32> to vector<8x32xf32>
    %107 = arith.addf %105, %106 : vector<8x32xf32>
    %c0_48 = arith.constant 0 : index
    %c0_49 = arith.constant 0 : index
    %c0_50 = arith.constant 0 : index
    %108 = vector.load %arg9[%c0_48, %c0_49, %c0_50] : memref<2x32x64xf32, #tpu.memory_space<vmem>>, vector<1x32x64xf32>
    %109 = vector.shape_cast %108 : vector<1x32x64xf32> to vector<32x64xf32>
    %cst_51 = arith.constant dense<0.000000e+00> : vector<8x64xf32>
    %110 = tpu.matmul %107, %109, %cst_51 {dimension_numbers = #tpu.dot_dimension_numbers<[1], [0], [0], [1], [0, 0, 1, 1], [], []>} : vector<8x32xf32>, vector<32x64xf32>, vector<8x64xf32> -> vector<8x64xf32>
    %c0_52 = arith.constant 0 : index
    %c0_53 = arith.constant 0 : index
    %c0_54 = arith.constant 0 : index
    %111 = vector.load %arg10[%c0_52, %c0_53, %c0_54] : memref<2x1x64xf32, #tpu.memory_space<vmem>>, vector<1x1x64xf32>
    %112 = vector.shape_cast %111 : vector<1x1x64xf32> to vector<1x64xf32>
    %113 = vector.broadcast %112 : vector<1x64xf32> to vector<8x64xf32>
    %114 = arith.addf %110, %113 : vector<8x64xf32>
    %cst_55 = arith.constant 5.000000e-01 : f32
    %115 = vector.broadcast %cst_55 : f32 to vector<8x64xf32>
    %116 = arith.mulf %115, %114 : vector<8x64xf32>
    %cst_56 = arith.constant 4.471500e-02 : f32
    %117 = vector.broadcast %cst_56 : f32 to vector<8x64xf32>
    %118 = arith.mulf %117, %114 : vector<8x64xf32>
    %119 = arith.mulf %118, %114 : vector<8x64xf32>
    %120 = arith.mulf %119, %114 : vector<8x64xf32>
    %121 = arith.addf %114, %120 : vector<8x64xf32>
    %cst_57 = arith.constant 0.797884583 : f32
    %122 = vector.broadcast %cst_57 : f32 to vector<8x64xf32>
    %123 = arith.mulf %122, %121 : vector<8x64xf32>
    %124 = math.tanh %123 : vector<8x64xf32>
    %cst_58 = arith.constant 1.000000e+00 : f32
    %125 = vector.broadcast %cst_58 : f32 to vector<8x64xf32>
    %126 = arith.addf %125, %124 : vector<8x64xf32>
    %127 = arith.mulf %116, %126 : vector<8x64xf32>
    %c0_59 = arith.constant 0 : index
    %c0_60 = arith.constant 0 : index
    %c0_61 = arith.constant 0 : index
    %128 = vector.load %arg11[%c0_59, %c0_60, %c0_61] : memref<2x64x32xf32, #tpu.memory_space<vmem>>, vector<1x64x32xf32>
    %129 = vector.shape_cast %128 : vector<1x64x32xf32> to vector<64x32xf32>
    %cst_62 = arith.constant dense<0.000000e+00> : vector<8x32xf32>
    %130 = tpu.matmul %127, %129, %cst_62 {dimension_numbers = #tpu.dot_dimension_numbers<[1], [0], [0], [1], [0, 0, 1, 1], [], []>} : vector<8x64xf32>, vector<64x32xf32>, vector<8x32xf32> -> vector<8x32xf32>
    %c0_63 = arith.constant 0 : index
    %c0_64 = arith.constant 0 : index
    %c0_65 = arith.constant 0 : index
    %131 = vector.load %arg12[%c0_63, %c0_64, %c0_65] : memref<2x1x32xf32, #tpu.memory_space<vmem>>, vector<1x1x32xf32>
    %132 = vector.shape_cast %131 : vector<1x1x32xf32> to vector<1x32xf32>
    %133 = vector.broadcast %132 : vector<1x32xf32> to vector<8x32xf32>
    %134 = arith.addf %130, %133 : vector<8x32xf32>
    %135 = arith.addf %134, %107 : vector<8x32xf32>
    %c0_66 = arith.constant 0 : index
    %c0_67 = arith.constant 0 : index
    %c0_68 = arith.constant 0 : index
    %136 = vector.load %arg13[%c0_66, %c0_67, %c0_68] : memref<2x2x32xf32, #tpu.memory_space<vmem>>, vector<1x2x32xf32>
    %137 = vector.shape_cast %136 : vector<1x2x32xf32> to vector<2x32xf32>
    %138 = vector.extract_strided_slice %137 {offsets = [0, 0], sizes = [1, 32], strides = [1, 1]} : vector<2x32xf32> to vector<1x32xf32>
    %139 = vector.extract_strided_slice %137 {offsets = [1, 0], sizes = [1, 32], strides = [1, 1]} : vector<2x32xf32> to vector<1x32xf32>
    %cst_69 = arith.constant dense<0.000000e+00> : vector<8xf32>
    %140 = vector.multi_reduction <add>, %135, %cst_69 [1] : vector<8x32xf32> to vector<8xf32>
    %141 = vector.shape_cast %140 : vector<8xf32> to vector<8x1xf32>
    %cst_70 = arith.constant 3.200000e+01 : f32
    %142 = vector.broadcast %cst_70 : f32 to vector<8x1xf32>
    %143 = arith.divf %141, %142 : vector<8x1xf32>
    %144 = vector.broadcast %143 : vector<8x1xf32> to vector<8x32xf32>
    %145 = arith.subf %135, %144 : vector<8x32xf32>
    %146 = arith.mulf %145, %145 : vector<8x32xf32>
    %cst_71 = arith.constant dense<0.000000e+00> : vector<8xf32>
    %147 = vector.multi_reduction <add>, %146, %cst_71 [1] : vector<8x32xf32> to vector<8xf32>
    %148 = vector.shape_cast %147 : vector<8xf32> to vector<8x1xf32>
    %cst_72 = arith.constant 3.200000e+01 : f32
    %149 = vector.broadcast %cst_72 : f32 to vector<8x1xf32>
    %150 = arith.divf %148, %149 : vector<8x1xf32>
    %cst_73 = arith.constant 9.99999996E-13 : f32
    %151 = vector.broadcast %cst_73 : f32 to vector<8x1xf32>
    %152 = arith.addf %150, %151 : vector<8x1xf32>
    %153 = math.rsqrt %152 : vector<8x1xf32>
    %154 = vector.broadcast %153 : vector<8x1xf32> to vector<8x32xf32>
    %155 = arith.mulf %145, %154 : vector<8x32xf32>
    %156 = vector.broadcast %138 : vector<1x32xf32> to vector<8x32xf32>
    %157 = arith.mulf %155, %156 : vector<8x32xf32>
    %158 = vector.broadcast %139 : vector<1x32xf32> to vector<8x32xf32>
    %159 = arith.addf %157, %158 : vector<8x32xf32>
    %c1_74 = arith.constant 1 : index
    %c0_75 = arith.constant 0 : index
    %c0_76 = arith.constant 0 : index
    %160 = vector.load %arg4[%c1_74, %c0_75, %c0_76] : memref<2x32x96xf32, #tpu.memory_space<vmem>>, vector<1x32x96xf32>
    %161 = vector.shape_cast %160 : vector<1x32x96xf32> to vector<32x96xf32>
    %cst_77 = arith.constant dense<0.000000e+00> : vector<8x96xf32>
    %162 = tpu.matmul %159, %161, %cst_77 {dimension_numbers = #tpu.dot_dimension_numbers<[1], [0], [0], [1], [0, 0, 1, 1], [], []>} : vector<8x32xf32>, vector<32x96xf32>, vector<8x96xf32> -> vector<8x96xf32>
    %c1_78 = arith.constant 1 : index
    %c0_79 = arith.constant 0 : index
    %c0_80 = arith.constant 0 : index
    %163 = vector.load %arg5[%c1_78, %c0_79, %c0_80] : memref<2x1x96xf32, #tpu.memory_space<vmem>>, vector<1x1x96xf32>
    %164 = vector.shape_cast %163 : vector<1x1x96xf32> to vector<1x96xf32>
    %165 = vector.broadcast %164 : vector<1x96xf32> to vector<8x96xf32>
    %166 = arith.addf %162, %165 : vector<8x96xf32>
    %c1_81 = arith.constant 1 : index
    %c0_82 = arith.constant 0 : index
    %c0_83 = arith.constant 0 : index
    %167 = vector.load %arg7[%c1_81, %c0_82, %c0_83] : memref<2x1x32xf32, #tpu.memory_space<vmem>>, vector<1x1x32xf32>
    %168 = vector.shape_cast %167 : vector<1x1x32xf32> to vector<1x32xf32>
    %169 = vector.extract_strided_slice %166 {offsets = [0, 0], sizes = [8, 16], strides = [1, 1]} : vector<8x96xf32> to vector<8x16xf32>
    %170 = vector.extract_strided_slice %166 {offsets = [0, 32], sizes = [8, 16], strides = [1, 1]} : vector<8x96xf32> to vector<8x16xf32>
    %171 = vector.extract_strided_slice %166 {offsets = [0, 64], sizes = [8, 16], strides = [1, 1]} : vector<8x96xf32> to vector<8x16xf32>
    %cst_84 = arith.constant dense<0.000000e+00> : vector<8x8xf32>
    %172 = tpu.matmul %169, %170, %cst_84 {dimension_numbers = #tpu.dot_dimension_numbers<[1], [1], [0], [0], [0, 0, 1, 0], [], []>} : vector<8x16xf32>, vector<8x16xf32>, vector<8x8xf32> -> vector<8x8xf32>
    %173 = vector.broadcast %30 : vector<1x8xf32> to vector<8x8xf32>
    %174 = arith.addf %172, %173 : vector<8x8xf32>
    %cst_85 = arith.constant dense<0xFF800000> : vector<8xf32>
    %175 = vector.multi_reduction <maximumf>, %174, %cst_85 [1] : vector<8x8xf32> to vector<8xf32>
    %176 = vector.shape_cast %175 : vector<8xf32> to vector<8x1xf32>
    %177 = vector.broadcast %176 : vector<8x1xf32> to vector<8x8xf32>
    %178 = arith.subf %174, %177 : vector<8x8xf32>
    %179 = math.exp %178 : vector<8x8xf32>
    %cst_86 = arith.constant dense<0.000000e+00> : vector<8xf32>
    %180 = vector.multi_reduction <add>, %179, %cst_86 [1] : vector<8x8xf32> to vector<8xf32>
    %181 = vector.shape_cast %180 : vector<8xf32> to vector<8x1xf32>
    %182 = tpu.reciprocal %181 {approx = true} : vector<8x1xf32> -> vector<8x1xf32>
    %183 = vector.broadcast %182 : vector<8x1xf32> to vector<8x8xf32>
    %184 = arith.mulf %179, %183 : vector<8x8xf32>
    %cst_87 = arith.constant dense<0.000000e+00> : vector<8x16xf32>
    %185 = tpu.matmul %184, %171, %cst_87 {dimension_numbers = #tpu.dot_dimension_numbers<[1], [0], [0], [1], [0, 0, 1, 1], [], []>} : vector<8x8xf32>, vector<8x16xf32>, vector<8x16xf32> -> vector<8x16xf32>
    %c1_88 = arith.constant 1 : index
    %c0_89 = arith.constant 0 : index
    %c0_90 = arith.constant 0 : index
    %c0_91 = arith.constant 0 : index
    %186 = vector.load %arg6[%c1_88, %c0_89, %c0_90, %c0_91] : memref<2x2x16x32xf32, #tpu.memory_space<vmem>>, vector<1x1x16x32xf32>
    %187 = vector.shape_cast %186 : vector<1x1x16x32xf32> to vector<16x32xf32>
    %cst_92 = arith.constant dense<0.000000e+00> : vector<8x32xf32>
    %188 = tpu.matmul %185, %187, %cst_92 {dimension_numbers = #tpu.dot_dimension_numbers<[1], [0], [0], [1], [0, 0, 1, 1], [], []>} : vector<8x16xf32>, vector<16x32xf32>, vector<8x32xf32> -> vector<8x32xf32>
    %189 = vector.broadcast %168 : vector<1x32xf32> to vector<8x32xf32>
    %190 = arith.addf %189, %188 : vector<8x32xf32>
    %191 = vector.extract_strided_slice %166 {offsets = [0, 16], sizes = [8, 16], strides = [1, 1]} : vector<8x96xf32> to vector<8x16xf32>
    %192 = vector.extract_strided_slice %166 {offsets = [0, 48], sizes = [8, 16], strides = [1, 1]} : vector<8x96xf32> to vector<8x16xf32>
    %193 = vector.extract_strided_slice %166 {offsets = [0, 80], sizes = [8, 16], strides = [1, 1]} : vector<8x96xf32> to vector<8x16xf32>
    %cst_93 = arith.constant dense<0.000000e+00> : vector<8x8xf32>
    %194 = tpu.matmul %191, %192, %cst_93 {dimension_numbers = #tpu.dot_dimension_numbers<[1], [1], [0], [0], [0, 0, 1, 0], [], []>} : vector<8x16xf32>, vector<8x16xf32>, vector<8x8xf32> -> vector<8x8xf32>
    %195 = vector.broadcast %30 : vector<1x8xf32> to vector<8x8xf32>
    %196 = arith.addf %194, %195 : vector<8x8xf32>
    %cst_94 = arith.constant dense<0xFF800000> : vector<8xf32>
    %197 = vector.multi_reduction <maximumf>, %196, %cst_94 [1] : vector<8x8xf32> to vector<8xf32>
    %198 = vector.shape_cast %197 : vector<8xf32> to vector<8x1xf32>
    %199 = vector.broadcast %198 : vector<8x1xf32> to vector<8x8xf32>
    %200 = arith.subf %196, %199 : vector<8x8xf32>
    %201 = math.exp %200 : vector<8x8xf32>
    %cst_95 = arith.constant dense<0.000000e+00> : vector<8xf32>
    %202 = vector.multi_reduction <add>, %201, %cst_95 [1] : vector<8x8xf32> to vector<8xf32>
    %203 = vector.shape_cast %202 : vector<8xf32> to vector<8x1xf32>
    %204 = tpu.reciprocal %203 {approx = true} : vector<8x1xf32> -> vector<8x1xf32>
    %205 = vector.broadcast %204 : vector<8x1xf32> to vector<8x8xf32>
    %206 = arith.mulf %201, %205 : vector<8x8xf32>
    %cst_96 = arith.constant dense<0.000000e+00> : vector<8x16xf32>
    %207 = tpu.matmul %206, %193, %cst_96 {dimension_numbers = #tpu.dot_dimension_numbers<[1], [0], [0], [1], [0, 0, 1, 1], [], []>} : vector<8x8xf32>, vector<8x16xf32>, vector<8x16xf32> -> vector<8x16xf32>
    %c1_97 = arith.constant 1 : index
    %c1_98 = arith.constant 1 : index
    %c0_99 = arith.constant 0 : index
    %c0_100 = arith.constant 0 : index
    %208 = vector.load %arg6[%c1_97, %c1_98, %c0_99, %c0_100] : memref<2x2x16x32xf32, #tpu.memory_space<vmem>>, vector<1x1x16x32xf32>
    %209 = vector.shape_cast %208 : vector<1x1x16x32xf32> to vector<16x32xf32>
    %cst_101 = arith.constant dense<0.000000e+00> : vector<8x32xf32>
    %210 = tpu.matmul %207, %209, %cst_101 {dimension_numbers = #tpu.dot_dimension_numbers<[1], [0], [0], [1], [0, 0, 1, 1], [], []>} : vector<8x16xf32>, vector<16x32xf32>, vector<8x32xf32> -> vector<8x32xf32>
    %211 = arith.addf %190, %210 : vector<8x32xf32>
    %212 = arith.addf %211, %159 : vector<8x32xf32>
    %c1_102 = arith.constant 1 : index
    %c0_103 = arith.constant 0 : index
    %c0_104 = arith.constant 0 : index
    %213 = vector.load %arg8[%c1_102, %c0_103, %c0_104] : memref<2x2x32xf32, #tpu.memory_space<vmem>>, vector<1x2x32xf32>
    %214 = vector.shape_cast %213 : vector<1x2x32xf32> to vector<2x32xf32>
    %215 = vector.extract_strided_slice %214 {offsets = [0, 0], sizes = [1, 32], strides = [1, 1]} : vector<2x32xf32> to vector<1x32xf32>
    %216 = vector.extract_strided_slice %214 {offsets = [1, 0], sizes = [1, 32], strides = [1, 1]} : vector<2x32xf32> to vector<1x32xf32>
    %cst_105 = arith.constant dense<0.000000e+00> : vector<8xf32>
    %217 = vector.multi_reduction <add>, %212, %cst_105 [1] : vector<8x32xf32> to vector<8xf32>
    %218 = vector.shape_cast %217 : vector<8xf32> to vector<8x1xf32>
    %cst_106 = arith.constant 3.200000e+01 : f32
    %219 = vector.broadcast %cst_106 : f32 to vector<8x1xf32>
    %220 = arith.divf %218, %219 : vector<8x1xf32>
    %221 = vector.broadcast %220 : vector<8x1xf32> to vector<8x32xf32>
    %222 = arith.subf %212, %221 : vector<8x32xf32>
    %223 = arith.mulf %222, %222 : vector<8x32xf32>
    %cst_107 = arith.constant dense<0.000000e+00> : vector<8xf32>
    %224 = vector.multi_reduction <add>, %223, %cst_107 [1] : vector<8x32xf32> to vector<8xf32>
    %225 = vector.shape_cast %224 : vector<8xf32> to vector<8x1xf32>
    %cst_108 = arith.constant 3.200000e+01 : f32
    %226 = vector.broadcast %cst_108 : f32 to vector<8x1xf32>
    %227 = arith.divf %225, %226 : vector<8x1xf32>
    %cst_109 = arith.constant 9.99999996E-13 : f32
    %228 = vector.broadcast %cst_109 : f32 to vector<8x1xf32>
    %229 = arith.addf %227, %228 : vector<8x1xf32>
    %230 = math.rsqrt %229 : vector<8x1xf32>
    %231 = vector.broadcast %230 : vector<8x1xf32> to vector<8x32xf32>
    %232 = arith.mulf %222, %231 : vector<8x32xf32>
    %233 = vector.broadcast %215 : vector<1x32xf32> to vector<8x32xf32>
    %234 = arith.mulf %232, %233 : vector<8x32xf32>
    %235 = vector.broadcast %216 : vector<1x32xf32> to vector<8x32xf32>
    %236 = arith.addf %234, %235 : vector<8x32xf32>
    %c1_110 = arith.constant 1 : index
    %c0_111 = arith.constant 0 : index
    %c0_112 = arith.constant 0 : index
    %237 = vector.load %arg9[%c1_110, %c0_111, %c0_112] : memref<2x32x64xf32, #tpu.memory_space<vmem>>, vector<1x32x64xf32>
    %238 = vector.shape_cast %237 : vector<1x32x64xf32> to vector<32x64xf32>
    %cst_113 = arith.constant dense<0.000000e+00> : vector<8x64xf32>
    %239 = tpu.matmul %236, %238, %cst_113 {dimension_numbers = #tpu.dot_dimension_numbers<[1], [0], [0], [1], [0, 0, 1, 1], [], []>} : vector<8x32xf32>, vector<32x64xf32>, vector<8x64xf32> -> vector<8x64xf32>
    %c1_114 = arith.constant 1 : index
    %c0_115 = arith.constant 0 : index
    %c0_116 = arith.constant 0 : index
    %240 = vector.load %arg10[%c1_114, %c0_115, %c0_116] : memref<2x1x64xf32, #tpu.memory_space<vmem>>, vector<1x1x64xf32>
    %241 = vector.shape_cast %240 : vector<1x1x64xf32> to vector<1x64xf32>
    %242 = vector.broadcast %241 : vector<1x64xf32> to vector<8x64xf32>
    %243 = arith.addf %239, %242 : vector<8x64xf32>
    %cst_117 = arith.constant 5.000000e-01 : f32
    %244 = vector.broadcast %cst_117 : f32 to vector<8x64xf32>
    %245 = arith.mulf %244, %243 : vector<8x64xf32>
    %cst_118 = arith.constant 4.471500e-02 : f32
    %246 = vector.broadcast %cst_118 : f32 to vector<8x64xf32>
    %247 = arith.mulf %246, %243 : vector<8x64xf32>
    %248 = arith.mulf %247, %243 : vector<8x64xf32>
    %249 = arith.mulf %248, %243 : vector<8x64xf32>
    %250 = arith.addf %243, %249 : vector<8x64xf32>
    %cst_119 = arith.constant 0.797884583 : f32
    %251 = vector.broadcast %cst_119 : f32 to vector<8x64xf32>
    %252 = arith.mulf %251, %250 : vector<8x64xf32>
    %253 = math.tanh %252 : vector<8x64xf32>
    %cst_120 = arith.constant 1.000000e+00 : f32
    %254 = vector.broadcast %cst_120 : f32 to vector<8x64xf32>
    %255 = arith.addf %254, %253 : vector<8x64xf32>
    %256 = arith.mulf %245, %255 : vector<8x64xf32>
    %c1_121 = arith.constant 1 : index
    %c0_122 = arith.constant 0 : index
    %c0_123 = arith.constant 0 : index
    %257 = vector.load %arg11[%c1_121, %c0_122, %c0_123] : memref<2x64x32xf32, #tpu.memory_space<vmem>>, vector<1x64x32xf32>
    %258 = vector.shape_cast %257 : vector<1x64x32xf32> to vector<64x32xf32>
    %cst_124 = arith.constant dense<0.000000e+00> : vector<8x32xf32>
    %259 = tpu.matmul %256, %258, %cst_124 {dimension_numbers = #tpu.dot_dimension_numbers<[1], [0], [0], [1], [0, 0, 1, 1], [], []>} : vector<8x64xf32>, vector<64x32xf32>, vector<8x32xf32> -> vector<8x32xf32>
    %c1_125 = arith.constant 1 : index
    %c0_126 = arith.constant 0 : index
    %c0_127 = arith.constant 0 : index
    %260 = vector.load %arg12[%c1_125, %c0_126, %c0_127] : memref<2x1x32xf32, #tpu.memory_space<vmem>>, vector<1x1x32xf32>
    %261 = vector.shape_cast %260 : vector<1x1x32xf32> to vector<1x32xf32>
    %262 = vector.broadcast %261 : vector<1x32xf32> to vector<8x32xf32>
    %263 = arith.addf %259, %262 : vector<8x32xf32>
    %264 = arith.addf %263, %236 : vector<8x32xf32>
    %c1_128 = arith.constant 1 : index
    %c0_129 = arith.constant 0 : index
    %c0_130 = arith.constant 0 : index
    %265 = vector.load %arg13[%c1_128, %c0_129, %c0_130] : memref<2x2x32xf32, #tpu.memory_space<vmem>>, vector<1x2x32xf32>
    %266 = vector.shape_cast %265 : vector<1x2x32xf32> to vector<2x32xf32>
    %267 = vector.extract_strided_slice %266 {offsets = [0, 0], sizes = [1, 32], strides = [1, 1]} : vector<2x32xf32> to vector<1x32xf32>
    %268 = vector.extract_strided_slice %266 {offsets = [1, 0], sizes = [1, 32], strides = [1, 1]} : vector<2x32xf32> to vector<1x32xf32>
    %cst_131 = arith.constant dense<0.000000e+00> : vector<8xf32>
    %269 = vector.multi_reduction <add>, %264, %cst_131 [1] : vector<8x32xf32> to vector<8xf32>
    %270 = vector.shape_cast %269 : vector<8xf32> to vector<8x1xf32>
    %cst_132 = arith.constant 3.200000e+01 : f32
    %271 = vector.broadcast %cst_132 : f32 to vector<8x1xf32>
    %272 = arith.divf %270, %271 : vector<8x1xf32>
    %273 = vector.broadcast %272 : vector<8x1xf32> to vector<8x32xf32>
    %274 = arith.subf %264, %273 : vector<8x32xf32>
    %275 = arith.mulf %274, %274 : vector<8x32xf32>
    %cst_133 = arith.constant dense<0.000000e+00> : vector<8xf32>
    %276 = vector.multi_reduction <add>, %275, %cst_133 [1] : vector<8x32xf32> to vector<8xf32>
    %277 = vector.shape_cast %276 : vector<8xf32> to vector<8x1xf32>
    %cst_134 = arith.constant 3.200000e+01 : f32
    %278 = vector.broadcast %cst_134 : f32 to vector<8x1xf32>
    %279 = arith.divf %277, %278 : vector<8x1xf32>
    %cst_135 = arith.constant 9.99999996E-13 : f32
    %280 = vector.broadcast %cst_135 : f32 to vector<8x1xf32>
    %281 = arith.addf %279, %280 : vector<8x1xf32>
    %282 = math.rsqrt %281 : vector<8x1xf32>
    %283 = vector.broadcast %282 : vector<8x1xf32> to vector<8x32xf32>
    %284 = arith.mulf %274, %283 : vector<8x32xf32>
    %285 = vector.broadcast %267 : vector<1x32xf32> to vector<8x32xf32>
    %286 = arith.mulf %284, %285 : vector<8x32xf32>
    %287 = vector.broadcast %268 : vector<1x32xf32> to vector<8x32xf32>
    %288 = arith.addf %286, %287 : vector<8x32xf32>
    %289 = vector.extract_strided_slice %288 {offsets = [0, 0], sizes = [1, 32], strides = [1, 1]} : vector<8x32xf32> to vector<1x32xf32>
    %c0_136 = arith.constant 0 : index
    %c0_137 = arith.constant 0 : index
    %290 = vector.load %arg14[%c0_136, %c0_137] : memref<32x32xf32, #tpu.memory_space<vmem>>, vector<32x32xf32>
    %cst_138 = arith.constant dense<0.000000e+00> : vector<1x32xf32>
    %291 = tpu.matmul %289, %290, %cst_138 {dimension_numbers = #tpu.dot_dimension_numbers<[1], [0], [0], [1], [0, 0, 1, 1], [], []>} : vector<1x32xf32>, vector<32x32xf32>, vector<1x32xf32> -> vector<1x32xf32>
    %c0_139 = arith.constant 0 : index
    %c0_140 = arith.constant 0 : index
    %292 = vector.load %arg15[%c0_139, %c0_140] : memref<1x32xf32, #tpu.memory_space<vmem>>, vector<1x32xf32>
    %293 = arith.addf %291, %292 : vector<1x32xf32>
    %294 = math.tanh %293 : vector<1x32xf32>
    %c0_141 = arith.constant 0 : index
    %c0_142 = arith.constant 0 : index
    %c0_143 = arith.constant 0 : index
    %295 = vector.load %arg16[%c0_141, %c0_142, %c0_143] : memref<1x1x32xf32, #tpu.memory_space<vmem>>, vector<1x1x32xf32>
    %296 = vector.shape_cast %295 : vector<1x1x32xf32> to vector<1x32xf32>
    %297 = vector.shape_cast %294 : vector<1x32xf32> to vector<1x1x32xf32>
    tpu.vector_store %arg16[%c0_141, %c0_142, %c0_143], %297 {strides = array<i32>} : memref<1x1x32xf32, #tpu.memory_space<vmem>>, vector<1x1x32xf32>,
    return
  }
  func.func @transform_0(%arg0: i32) -> (i32, i32, i32) {
    %c0_i32 = arith.constant 0 : i32
    %c0_i32_0 = arith.constant 0 : i32
    %c0_i32_1 = arith.constant 0 : i32
    return %arg0, %c0_i32, %c0_i32_0 : i32, i32, i32
  }
  func.func @transform_1(%arg0: i32) -> (i32, i32, i32) {
    %c0_i32 = arith.constant 0 : i32
    %c0_i32_0 = arith.constant 0 : i32
    %c0_i32_1 = arith.constant 0 : i32
    return %arg0, %c0_i32, %c0_i32_0 : i32, i32, i32
  }
  func.func @transform_2(%arg0: i32) -> (i32, i32) {
    %c0_i32 = arith.constant 0 : i32
    %c0_i32_0 = arith.constant 0 : i32
    %c0_i32_1 = arith.constant 0 : i32
    return %c0_i32, %c0_i32_0 : i32, i32
  }
  func.func @transform_3(%arg0: i32) -> (i32, i32, i32) {
    %c0_i32 = arith.constant 0 : i32
    %c0_i32_0 = arith.constant 0 : i32
    %c0_i32_1 = arith.constant 0 : i32
    %c0_i32_2 = arith.constant 0 : i32
    return %c0_i32, %c0_i32_0, %c0_i32_1 : i32, i32, i32
  }
  func.func @transform_4(%arg0: i32) -> (i32, i32, i32) {
    %c0_i32 = arith.constant 0 : i32
    %c0_i32_0 = arith.constant 0 : i32
    %c0_i32_1 = arith.constant 0 : i32
    %c0_i32_2 = arith.constant 0 : i32
    return %c0_i32, %c0_i32_0, %c0_i32_1 : i32, i32, i32
  }
  func.func @transform_5(%arg0: i32) -> (i32, i32, i32, i32) {
    %c0_i32 = arith.constant 0 : i32
    %c0_i32_0 = arith.constant 0 : i32
    %c0_i32_1 = arith.constant 0 : i32
    %c0_i32_2 = arith.constant 0 : i32
    %c0_i32_3 = arith.constant 0 : i32
    return %c0_i32, %c0_i32_0, %c0_i32_1, %c0_i32_2 : i32, i32, i32, i32
  }
  func.func @transform_6(%arg0: i32) -> (i32, i32, i32) {
    %c0_i32 = arith.constant 0 : i32
    %c0_i32_0 = arith.constant 0 : i32
    %c0_i32_1 = arith.constant 0 : i32
    %c0_i32_2 = arith.constant 0 : i32
    return %c0_i32, %c0_i32_0, %c0_i32_1 : i32, i32, i32
  }
  func.func @transform_7(%arg0: i32) -> (i32, i32, i32) {
    %c0_i32 = arith.constant 0 : i32
    %c0_i32_0 = arith.constant 0 : i32
    %c0_i32_1 = arith.constant 0 : i32
    %c0_i32_2 = arith.constant 0 : i32
    return %c0_i32, %c0_i32_0, %c0_i32_1 : i32, i32, i32
  }
  func.func @transform_8(%arg0: i32) -> (i32, i32, i32) {
    %c0_i32 = arith.constant 0 : i32
    %c0_i32_0 = arith.constant 0 : i32
    %c0_i32_1 = arith.constant 0 : i32
    %c0_i32_2 = arith.constant 0 : i32
    return %c0_i32, %c0_i32_0, %c0_i32_1 : i32, i32, i32
  }
  func.func @transform_9(%arg0: i32) -> (i32, i32, i32) {
    %c0_i32 = arith.constant 0 : i32
    %c0_i32_0 = arith.constant 0 : i32
    %c0_i32_1 = arith.constant 0 : i32
    %c0_i32_2 = arith.constant 0 : i32
    return %c0_i32, %c0_i32_0, %c0_i32_1 : i32, i32, i32
  }
  func.func @transform_10(%arg0: i32) -> (i32, i32, i32) {
    %c0_i32 = arith.constant 0 : i32
    %c0_i32_0 = arith.constant 0 : i32
    %c0_i32_1 = arith.constant 0 : i32
    %c0_i32_2 = arith.constant 0 : i32
    return %c0_i32, %c0_i32_0, %c0_i32_1 : i32, i32, i32
  }
  func.func @transform_11(%arg0: i32) -> (i32, i32, i32) {
    %c0_i32 = arith.constant 0 : i32
    %c0_i32_0 = arith.constant 0 : i32
    %c0_i32_1 = arith.constant 0 : i32
    %c0_i32_2 = arith.constant 0 : i32
    return %c0_i32, %c0_i32_0, %c0_i32_1 : i32, i32, i32
  }
  func.func @transform_12(%arg0: i32) -> (i32, i32, i32) {
    %c0_i32 = arith.constant 0 : i32
    %c0_i32_0 = arith.constant 0 : i32
    %c0_i32_1 = arith.constant 0 : i32
    %c0_i32_2 = arith.constant 0 : i32
    return %c0_i32, %c0_i32_0, %c0_i32_1 : i32, i32, i32
  }
  func.func @transform_13(%arg0: i32) -> (i32, i32) {
    %c0_i32 = arith.constant 0 : i32
    %c0_i32_0 = arith.constant 0 : i32
    %c0_i32_1 = arith.constant 0 : i32
    return %c0_i32, %c0_i32_0 : i32, i32
  }
  func.func @transform_14(%arg0: i32) -> (i32, i32) {
    %c0_i32 = arith.constant 0 : i32
    %c0_i32_0 = arith.constant 0 : i32
    %c0_i32_1 = arith.constant 0 : i32
    return %c0_i32, %c0_i32_0 : i32, i32
  }
  func.func @transform_15(%arg0: i32) -> (i32, i32, i32) {
    %c0_i32 = arith.constant 0 : i32
    %c0_i32_0 = arith.constant 0 : i32
    %c0_i32_1 = arith.constant 0 : i32
    return %arg0, %c0_i32, %c0_i32_0 : i32, i32, i32
  }
}

</mosaic_0001>

<llo_original>
// kernel: transformer_rln_forward.1
$region0: #{transformer_rln_forward.1}
  #allocation0 [shape = 'u32[]', space=smem, size = 0x4, offset = 0x4, fixed_abs, tag = 'smem constant byte address 0x4 - core index']
  #allocation1 [shape = 'u32[72,128]{1,0:T(1,128)}', space=vmem, size = 0x9000, scoped, tag = 'internal scratch']
  %s0 = inlined_call_operand.vmem [shape: f32[2,8,32], index: 0, kind: input, shape index: {}]
  %s1 = inlined_call_operand.vmem [shape: f32[2,1,8], index: 1, kind: input, shape index: {}]
  %s2 = inlined_call_operand.vmem [shape: f32[2,32], index: 2, kind: input, shape index: {}]
  %s3 = inlined_call_operand.vmem [shape: f32[2,32,96], index: 3, kind: input, shape index: {}]
  %s4 = inlined_call_operand.vmem [shape: f32[2,1,96], index: 4, kind: input, shape index: {}]
  %s5 = inlined_call_operand.vmem [shape: f32[2,2,16,32], index: 5, kind: input, shape index: {}]
  %s6 = inlined_call_operand.vmem [shape: f32[2,1,32], index: 6, kind: input, shape index: {}]
  %s7 = inlined_call_operand.vmem [shape: f32[2,2,32], index: 7, kind: input, shape index: {}]
  %s8 = inlined_call_operand.vmem [shape: f32[2,32,64], index: 8, kind: input, shape index: {}]
  %s9 = inlined_call_operand.vmem [shape: f32[2,1,64], index: 9, kind: input, shape index: {}]
  %s10 = inlined_call_operand.vmem [shape: f32[2,64,32], index: 10, kind: input, shape index: {}]
  %s11 = inlined_call_operand.vmem [shape: f32[2,1,32], index: 11, kind: input, shape index: {}]
  %s12 = inlined_call_operand.vmem [shape: f32[2,2,32], index: 12, kind: input, shape index: {}]
  %s13 = inlined_call_operand.vmem [shape: f32[32,32], index: 13, kind: input, shape index: {}]
  %s14 = inlined_call_operand.vmem [shape: f32[1,32], index: 14, kind: input, shape index: {}]
  %s15 = inlined_call_operand.hbm [shape: f32[2,1,32], index: 15, kind: output, shape index: {}]
  %s16 = sld [smem:[#allocation0]]
  $region93: #{transformer_rln_forward.1} parent=0
    _
  %s18 = ssub.s32 1, %s16
  %s19 = scalar_select 0, %s18, %s16
  $region1: #{transformer_rln_forward.1} parent=0
    #allocation2 [shape = 'u8[1024]{0}', space=vmem, size = 0x400, scoped, tag = 'output window, operand 0']
    #allocation3 [shape = 's32[2]{0}', space=sflag, size = 0x8, scoped, tag = 'scoped memory for transformer_rln_forward.1']
    %20 = vsyncpa [#allocation3], 0
    %s21 = scalar_lea.sflag [#allocation3], 1
    %22 = vsyncpa %s21, 0
    loop: start=0, step=1, limit=4
    $region2: #{transformer_rln_forward.1} parent=1 // loop_pre_header
      _
    $region3: #{transformer_rln_forward.1} parent=1 // loop_header
      %s24 = sphi 0, %s28
      %p25 = scmp.ge.s32.totalorder %s24, 4
      %s34 = sphi 0, %s36
      %s37 = sphi 0, %s34
      %s38 = sphi 0, %s37
      %s54 = sphi 0, %s38
      %s60 = sphi 0, %s62
      %s63 = sphi 0, %s60
      %s64 = sphi 0, %s63
      %s80 = sphi 0, %s64
      %s84 = sphi 0, %s84
      %s86 = sphi 0, %s84
      %s87 = sphi 0, %s86
      %s101 = sphi 0, %s87
      %s105 = sphi 0, %s105
      %s107 = sphi 0, %s105
      %s108 = sphi 0, %s107
      %s122 = sphi 0, %s108
      %s126 = sphi 0, %s126
      %s128 = sphi 0, %s126
      %s129 = sphi 0, %s128
      %s143 = sphi 0, %s129
      %s147 = sphi 0, %s147
      %s149 = sphi 0, %s147
      %s150 = sphi 0, %s149
      %s164 = sphi 0, %s150
      %s168 = sphi 0, %s168
      %s170 = sphi 0, %s168
      %s171 = sphi 0, %s170
      %s185 = sphi 0, %s171
      %s189 = sphi 0, %s189
      %s191 = sphi 0, %s189
      %s192 = sphi 0, %s191
      %s206 = sphi 0, %s192
      %s210 = sphi 0, %s210
      %s212 = sphi 0, %s210
      %s213 = sphi 0, %s212
      %s227 = sphi 0, %s213
      %s231 = sphi 0, %s231
      %s233 = sphi 0, %s231
      %s234 = sphi 0, %s233
      %s248 = sphi 0, %s234
      %s252 = sphi 0, %s252
      %s254 = sphi 0, %s252
      %s255 = sphi 0, %s254
      %s269 = sphi 0, %s255
      %s273 = sphi 0, %s273
      %s275 = sphi 0, %s273
      %s276 = sphi 0, %s275
      %s290 = sphi 0, %s276
      %s294 = sphi 0, %s294
      %s296 = sphi 0, %s294
      %s297 = sphi 0, %s296
      %s311 = sphi 0, %s297
      %s315 = sphi 0, %s315
      %s317 = sphi 0, %s315
      %s318 = sphi 0, %s317
      %s332 = sphi 0, %s318
      %s336 = sphi 0, %s336
      %s338 = sphi 0, %s336
      %s339 = sphi 0, %s338
      %s353 = sphi 0, %s339
      %s359 = sphi 0, %s361
      %s362 = sphi 0, %s359
      %s363 = sphi 0, %s362
      %s379 = sphi 0, %s363
    $region4: #{transformer_rln_forward.1} parent=1 // loop_header_branch
      %27 = sbr.rel (%p25) target = $region8
    $region5: #{transformer_rln_forward.1} parent=1 // loop_body
      %s29 = ssub.s32 %s24, 1
      %s30 = ssub.s32 %s24, 2
      %s31 = sadd.s32 %s24, 1
      %s32 = ssub.s32 %s24, %s31
      %p33 = scmp.eq.s32.totalorder %s32, 0
      %s35 = sadd.s32 %s34, 1
      %s36 = scalar_select %p33, %s34, %s35
      %p39 = pneg %p33
      %p40 = scmp.eq.s32.totalorder %s24, 1
      %p41 = por %p39, %p40
      %p42 = scmp.ne.s32.totalorder %s34, %s37
      %p43 = scmp.eq.s32.totalorder %s24, 0
      %p44 = por %p42, %p43
      %p45 = scmp.ne.s32.totalorder %s34, %s37
      %p46 = scmp.eq.s32.totalorder %s29, 1
      %p47 = por %p45, %p46
      %p48 = scmp.ne.s32.totalorder %s37, %s38
      %p49 = scmp.eq.s32.totalorder %s29, 0
      %p50 = por %p48, %p49
      %p51 = scmp.ne.s32.totalorder %s37, %s38
      %p52 = scmp.eq.s32.totalorder %s30, 1
      %p53 = por %p51, %p52
      %p55 = scmp.ne.s32.totalorder %s38, %s54
      %p56 = scmp.eq.s32.totalorder %s30, 0
      %p57 = por %p55, %p56
      %s58 = ssub.s32 %s24, %s31
      %p59 = scmp.eq.s32.totalorder %s58, 0
      %s61 = sadd.s32 %s60, 1
      %s62 = scalar_select %p59, %s60, %s61
      %p65 = pneg %p59
      %p66 = scmp.eq.s32.totalorder %s24, 1
      %p67 = por %p65, %p66
      %p68 = scmp.ne.s32.totalorder %s60, %s63
      %p69 = scmp.eq.s32.totalorder %s24, 0
      %p70 = por %p68, %p69
      %p71 = scmp.ne.s32.totalorder %s60, %s63
      %p72 = scmp.eq.s32.totalorder %s29, 1
      %p73 = por %p71, %p72
      %p74 = scmp.ne.s32.totalorder %s63, %s64
      %p75 = scmp.eq.s32.totalorder %s29, 0
      %p76 = por %p74, %p75
      %p77 = scmp.ne.s32.totalorder %s63, %s64
      %p78 = scmp.eq.s32.totalorder %s30, 1
      %p79 = por %p77, %p78
      %p81 = scmp.ne.s32.totalorder %s64, %s80
      %p82 = scmp.eq.s32.totalorder %s30, 0
      %p83 = por %p81, %p82
      %s85 = sadd.s32 %s84, 1
      %p88 = scmp.eq.s32.totalorder %s24, 1
      %p89 = scmp.ne.s32.totalorder %s84, %s86
      %p90 = scmp.eq.s32.totalorder %s24, 0
      %p91 = por %p89, %p90
      %p92 = scmp.ne.s32.totalorder %s84, %s86
      %p93 = scmp.eq.s32.totalorder %s29, 1
      %p94 = por %p92, %p93
      %p95 = scmp.ne.s32.totalorder %s86, %s87
      %p96 = scmp.eq.s32.totalorder %s29, 0
      %p97 = por %p95, %p96
      %p98 = scmp.ne.s32.totalorder %s86, %s87
      %p99 = scmp.eq.s32.totalorder %s30, 1
      %p100 = por %p98, %p99
      %p102 = scmp.ne.s32.totalorder %s87, %s101
      %p103 = scmp.eq.s32.totalorder %s30, 0
      %p104 = por %p102, %p103
      %s106 = sadd.s32 %s105, 1
      %p109 = scmp.eq.s32.totalorder %s24, 1
      %p110 = scmp.ne.s32.totalorder %s105, %s107
      %p111 = scmp.eq.s32.totalorder %s24, 0
      %p112 = por %p110, %p111
      %p113 = scmp.ne.s32.totalorder %s105, %s107
      %p114 = scmp.eq.s32.totalorder %s29, 1
      %p115 = por %p113, %p114
      %p116 = scmp.ne.s32.totalorder %s107, %s108
      %p117 = scmp.eq.s32.totalorder %s29, 0
      %p118 = por %p116, %p117
      %p119 = scmp.ne.s32.totalorder %s107, %s108
      %p120 = scmp.eq.s32.totalorder %s30, 1
      %p121 = por %p119, %p120
      %p123 = scmp.ne.s32.totalorder %s108, %s122
      %p124 = scmp.eq.s32.totalorder %s30, 0
      %p125 = por %p123, %p124
      %s127 = sadd.s32 %s126, 1
      %p130 = scmp.eq.s32.totalorder %s24, 1
      %p131 = scmp.ne.s32.totalorder %s126, %s128
      %p132 = scmp.eq.s32.totalorder %s24, 0
      %p133 = por %p131, %p132
      %p134 = scmp.ne.s32.totalorder %s126, %s128
      %p135 = scmp.eq.s32.totalorder %s29, 1
      %p136 = por %p134, %p135
      %p137 = scmp.ne.s32.totalorder %s128, %s129
      %p138 = scmp.eq.s32.totalorder %s29, 0
      %p139 = por %p137, %p138
      %p140 = scmp.ne.s32.totalorder %s128, %s129
      %p141 = scmp.eq.s32.totalorder %s30, 1
      %p142 = por %p140, %p141
      %p144 = scmp.ne.s32.totalorder %s129, %s143
      %p145 = scmp.eq.s32.totalorder %s30, 0
      %p146 = por %p144, %p145
      %s148 = sadd.s32 %s147, 1
      %p151 = scmp.eq.s32.totalorder %s24, 1
      %p152 = scmp.ne.s32.totalorder %s147, %s149
      %p153 = scmp.eq.s32.totalorder %s24, 0
      %p154 = por %p152, %p153
      %p155 = scmp.ne.s32.totalorder %s147, %s149
      %p156 = scmp.eq.s32.totalorder %s29, 1
      %p157 = por %p155, %p156
      %p158 = scmp.ne.s32.totalorder %s149, %s150
      %p159 = scmp.eq.s32.totalorder %s29, 0
      %p160 = por %p158, %p159
      %p161 = scmp.ne.s32.totalorder %s149, %s150
      %p162 = scmp.eq.s32.totalorder %s30, 1
      %p163 = por %p161, %p162
      %p165 = scmp.ne.s32.totalorder %s150, %s164
      %p166 = scmp.eq.s32.totalorder %s30, 0
      %p167 = por %p165, %p166
      %s169 = sadd.s32 %s168, 1
      %p172 = scmp.eq.s32.totalorder %s24, 1
      %p173 = scmp.ne.s32.totalorder %s168, %s170
      %p174 = scmp.eq.s32.totalorder %s24, 0
      %p175 = por %p173, %p174
      %p176 = scmp.ne.s32.totalorder %s168, %s170
      %p177 = scmp.eq.s32.totalorder %s29, 1
      %p178 = por %p176, %p177
      %p179 = scmp.ne.s32.totalorder %s170, %s171
      %p180 = scmp.eq.s32.totalorder %s29, 0
      %p181 = por %p179, %p180
      %p182 = scmp.ne.s32.totalorder %s170, %s171
      %p183 = scmp.eq.s32.totalorder %s30, 1
      %p184 = por %p182, %p183
      %p186 = scmp.ne.s32.totalorder %s171, %s185
      %p187 = scmp.eq.s32.totalorder %s30, 0
      %p188 = por %p186, %p187
      %s190 = sadd.s32 %s189, 1
      %p193 = scmp.eq.s32.totalorder %s24, 1
      %p194 = scmp.ne.s32.totalorder %s189, %s191
      %p195 = scmp.eq.s32.totalorder %s24, 0
      %p196 = por %p194, %p195
      %p197 = scmp.ne.s32.totalorder %s189, %s191
      %p198 = scmp.eq.s32.totalorder %s29, 1
      %p199 = por %p197, %p198
      %p200 = scmp.ne.s32.totalorder %s191, %s192
      %p201 = scmp.eq.s32.totalorder %s29, 0
      %p202 = por %p200, %p201
      %p203 = scmp.ne.s32.totalorder %s191, %s192
      %p204 = scmp.eq.s32.totalorder %s30, 1
      %p205 = por %p203, %p204
      %p207 = scmp.ne.s32.totalorder %s192, %s206
      %p208 = scmp.eq.s32.totalorder %s30, 0
      %p209 = por %p207, %p208
      %s211 = sadd.s32 %s210, 1
      %p214 = scmp.eq.s32.totalorder %s24, 1
      %p215 = scmp.ne.s32.totalorder %s210, %s212
      %p216 = scmp.eq.s32.totalorder %s24, 0
      %p217 = por %p215, %p216
      %p218 = scmp.ne.s32.totalorder %s210, %s212
      %p219 = scmp.eq.s32.totalorder %s29, 1
      %p220 = por %p218, %p219
      %p221 = scmp.ne.s32.totalorder %s212, %s213
      %p222 = scmp.eq.s32.totalorder %s29, 0
      %p223 = por %p221, %p222
      %p224 = scmp.ne.s32.totalorder %s212, %s213
      %p225 = scmp.eq.s32.totalorder %s30, 1
      %p226 = por %p224, %p225
      %p228 = scmp.ne.s32.totalorder %s213, %s227
      %p229 = scmp.eq.s32.totalorder %s30, 0
      %p230 = por %p228, %p229
      %s232 = sadd.s32 %s231, 1
      %p235 = scmp.eq.s32.totalorder %s24, 1
      %p236 = scmp.ne.s32.totalorder %s231, %s233
      %p237 = scmp.eq.s32.totalorder %s24, 0
      %p238 = por %p236, %p237
      %p239 = scmp.ne.s32.totalorder %s231, %s233
      %p240 = scmp.eq.s32.totalorder %s29, 1
      %p241 = por %p239, %p240
      %p242 = scmp.ne.s32.totalorder %s233, %s234
      %p243 = scmp.eq.s32.totalorder %s29, 0
      %p244 = por %p242, %p243
      %p245 = scmp.ne.s32.totalorder %s233, %s234
      %p246 = scmp.eq.s32.totalorder %s30, 1
      %p247 = por %p245, %p246
      %p249 = scmp.ne.s32.totalorder %s234, %s248
      %p250 = scmp.eq.s32.totalorder %s30, 0
      %p251 = por %p249, %p250
      %s253 = sadd.s32 %s252, 1
      %p256 = scmp.eq.s32.totalorder %s24, 1
      %p257 = scmp.ne.s32.totalorder %s252, %s254
      %p258 = scmp.eq.s32.totalorder %s24, 0
      %p259 = por %p257, %p258
      %p260 = scmp.ne.s32.totalorder %s252, %s254
      %p261 = scmp.eq.s32.totalorder %s29, 1
      %p262 = por %p260, %p261
      %p263 = scmp.ne.s32.totalorder %s254, %s255
      %p264 = scmp.eq.s32.totalorder %s29, 0
      %p265 = por %p263, %p264
      %p266 = scmp.ne.s32.totalorder %s254, %s255
      %p267 = scmp.eq.s32.totalorder %s30, 1
      %p268 = por %p266, %p267
      %p270 = scmp.ne.s32.totalorder %s255, %s269
      %p271 = scmp.eq.s32.totalorder %s30, 0
      %p272 = por %p270, %p271
      %s274 = sadd.s32 %s273, 1
      %p277 = scmp.eq.s32.totalorder %s24, 1
      %p278 = scmp.ne.s32.totalorder %s273, %s275
      %p279 = scmp.eq.s32.totalorder %s24, 0
      %p280 = por %p278, %p279
      %p281 = scmp.ne.s32.totalorder %s273, %s275
      %p282 = scmp.eq.s32.totalorder %s29, 1
      %p283 = por %p281, %p282
      %p284 = scmp.ne.s32.totalorder %s275, %s276
      %p285 = scmp.eq.s32.totalorder %s29, 0
      %p286 = por %p284, %p285
      %p287 = scmp.ne.s32.totalorder %s275, %s276
      %p288 = scmp.eq.s32.totalorder %s30, 1
      %p289 = por %p287, %p288
      %p291 = scmp.ne.s32.totalorder %s276, %s290
      %p292 = scmp.eq.s32.totalorder %s30, 0
      %p293 = por %p291, %p292
      %s295 = sadd.s32 %s294, 1
      %p298 = scmp.eq.s32.totalorder %s24, 1
      %p299 = scmp.ne.s32.totalorder %s294, %s296
      %p300 = scmp.eq.s32.totalorder %s24, 0
      %p301 = por %p299, %p300
      %p302 = scmp.ne.s32.totalorder %s294, %s296
      %p303 = scmp.eq.s32.totalorder %s29, 1
      %p304 = por %p302, %p303
      %p305 = scmp.ne.s32.totalorder %s296, %s297
      %p306 = scmp.eq.s32.totalorder %s29, 0
      %p307 = por %p305, %p306
      %p308 = scmp.ne.s32.totalorder %s296, %s297
      %p309 = scmp.eq.s32.totalorder %s30, 1
      %p310 = por %p308, %p309
      %p312 = scmp.ne.s32.totalorder %s297, %s311
      %p313 = scmp.eq.s32.totalorder %s30, 0
      %p314 = por %p312, %p313
      %s316 = sadd.s32 %s315, 1
      %p319 = scmp.eq.s32.totalorder %s24, 1
      %p320 = scmp.ne.s32.totalorder %s315, %s317
      %p321 = scmp.eq.s32.totalorder %s24, 0
      %p322 = por %p320, %p321
      %p323 = scmp.ne.s32.totalorder %s315, %s317
      %p324 = scmp.eq.s32.totalorder %s29, 1
      %p325 = por %p323, %p324
      %p326 = scmp.ne.s32.totalorder %s317, %s318
      %p327 = scmp.eq.s32.totalorder %s29, 0
      %p328 = por %p326, %p327
      %p329 = scmp.ne.s32.totalorder %s317, %s318
      %p330 = scmp.eq.s32.totalorder %s30, 1
      %p331 = por %p329, %p330
      %p333 = scmp.ne.s32.totalorder %s318, %s332
      %p334 = scmp.eq.s32.totalorder %s30, 0
      %p335 = por %p333, %p334
      %s337 = sadd.s32 %s336, 1
      %p340 = scmp.eq.s32.totalorder %s24, 1
      %p341 = scmp.ne.s32.totalorder %s336, %s338
      %p342 = scmp.eq.s32.totalorder %s24, 0
      %p343 = por %p341, %p342
      %p344 = scmp.ne.s32.totalorder %s336, %s338
      %p345 = scmp.eq.s32.totalorder %s29, 1
      %p346 = por %p344, %p345
      %p347 = scmp.ne.s32.totalorder %s338, %s339
      %p348 = scmp.eq.s32.totalorder %s29, 0
      %p349 = por %p347, %p348
      %p350 = scmp.ne.s32.totalorder %s338, %s339
      %p351 = scmp.eq.s32.totalorder %s30, 1
      %p352 = por %p350, %p351
      %p354 = scmp.ne.s32.totalorder %s339, %s353
      %p355 = scmp.eq.s32.totalorder %s30, 0
      %p356 = por %p354, %p355
      %s357 = ssub.s32 %s24, %s31
      %p358 = scmp.eq.s32.totalorder %s357, 0
      %s360 = sadd.s32 %s359, 1
      %s361 = scalar_select %p358, %s359, %s360
      %p364 = pneg %p358
      %p365 = scmp.eq.s32.totalorder %s24, 1
      %p366 = por %p364, %p365
      %p367 = scmp.ne.s32.totalorder %s359, %s362
      %p368 = scmp.eq.s32.totalorder %s24, 0
      %p369 = por %p367, %p368
      %p370 = scmp.ne.s32.totalorder %s359, %s362
      %p371 = scmp.eq.s32.totalorder %s29, 1
      %p372 = por %p370, %p371
      %p373 = scmp.ne.s32.totalorder %s362, %s363
      %p374 = scmp.eq.s32.totalorder %s29, 0
      %p375 = por %p373, %p374
      %p376 = scmp.ne.s32.totalorder %s362, %s363
      %p377 = scmp.eq.s32.totalorder %s30, 1
      %p378 = por %p376, %p377
      %p380 = scmp.ne.s32.totalorder %s363, %s379
      %p381 = scmp.eq.s32.totalorder %s30, 0
      %p382 = por %p380, %p381
      %p383 = scmp.le.s32.totalorder 1, %s24
      %p384 = scmp.lt.s32.totalorder %s24, 3
      %p385 = pnand %p383, %p384
      %p386 = pneg %p385
      // Predicated region
      $region9: #{transformer_rln_forward.1} parent=5 // pred_check
        _
      $region10: #{transformer_rln_forward.1} parent=5 // pred_check_branch
        %388 = sbr.rel (%p385) target = $region12
      $region11: #{transformer_rln_forward.1} parent=5 // pred_region
        %s389 = ssub.s32 %s24, 1
        // Predicated region
        $region13: #{transformer_rln_forward.1} parent=11 // pred_check
          %p390 = pneg %p97
        $region14: #{transformer_rln_forward.1} parent=11 // pred_check_branch
          %392 = sbr.rel (%p390) target = $region16
        $region15: #{transformer_rln_forward.1} parent=11 // pred_region
          _
        $region16: #{transformer_rln_forward.1} parent=11 // pred_fallthru
          _
        // Predicated region
        $region17: #{transformer_rln_forward.1} parent=11 // pred_check
          %p393 = pneg %p118
        $region18: #{transformer_rln_forward.1} parent=11 // pred_check_branch
          %395 = sbr.rel (%p393) target = $region20
        $region19: #{transformer_rln_forward.1} parent=11 // pred_region
          _
        $region20: #{transformer_rln_forward.1} parent=11 // pred_fallthru
          _
        // Predicated region
        $region21: #{transformer_rln_forward.1} parent=11 // pred_check
          %p396 = pneg %p139
        $region22: #{transformer_rln_forward.1} parent=11 // pred_check_branch
          %398 = sbr.rel (%p396) target = $region24
        $region23: #{transformer_rln_forward.1} parent=11 // pred_region
          _
        $region24: #{transformer_rln_forward.1} parent=11 // pred_fallthru
          _
        // Predicated region
        $region25: #{transformer_rln_forward.1} parent=11 // pred_check
          %p399 = pneg %p160
        $region26: #{transformer_rln_forward.1} parent=11 // pred_check_branch
          %401 = sbr.rel (%p399) target = $region28
        $region27: #{transformer_rln_forward.1} parent=11 // pred_region
          _
        $region28: #{transformer_rln_forward.1} parent=11 // pred_fallthru
          _
        // Predicated region
        $region29: #{transformer_rln_forward.1} parent=11 // pred_check
          %p402 = pneg %p181
        $region30: #{transformer_rln_forward.1} parent=11 // pred_check_branch
          %404 = sbr.rel (%p402) target = $region32
        $region31: #{transformer_rln_forward.1} parent=11 // pred_region
          _
        $region32: #{transformer_rln_forward.1} parent=11 // pred_fallthru
          _
        // Predicated region
        $region33: #{transformer_rln_forward.1} parent=11 // pred_check
          %p405 = pneg %p202
        $region34: #{transformer_rln_forward.1} parent=11 // pred_check_branch
          %407 = sbr.rel (%p405) target = $region36
        $region35: #{transformer_rln_forward.1} parent=11 // pred_region
          _
        $region36: #{transformer_rln_forward.1} parent=11 // pred_fallthru
          _
        // Predicated region
        $region37: #{transformer_rln_forward.1} parent=11 // pred_check
          %p408 = pneg %p223
        $region38: #{transformer_rln_forward.1} parent=11 // pred_check_branch
          %410 = sbr.rel (%p408) target = $region40
        $region39: #{transformer_rln_forward.1} parent=11 // pred_region
          _
        $region40: #{transformer_rln_forward.1} parent=11 // pred_fallthru
          _
        // Predicated region
        $region41: #{transformer_rln_forward.1} parent=11 // pred_check
          %p411 = pneg %p244
        $region42: #{transformer_rln_forward.1} parent=11 // pred_check_branch
          %413 = sbr.rel (%p411) target = $region44
        $region43: #{transformer_rln_forward.1} parent=11 // pred_region
          _
        $region44: #{transformer_rln_forward.1} parent=11 // pred_fallthru
          _
        // Predicated region
        $region45: #{transformer_rln_forward.1} parent=11 // pred_check
          %p414 = pneg %p265
        $region46: #{transformer_rln_forward.1} parent=11 // pred_check_branch
          %416 = sbr.rel (%p414) target = $region48
        $region47: #{transformer_rln_forward.1} parent=11 // pred_region
          _
        $region48: #{transformer_rln_forward.1} parent=11 // pred_fallthru
          _
        // Predicated region
        $region49: #{transformer_rln_forward.1} parent=11 // pred_check
          %p417 = pneg %p286
        $region50: #{transformer_rln_forward.1} parent=11 // pred_check_branch
          %419 = sbr.rel (%p417) target = $region52
        $region51: #{transformer_rln_forward.1} parent=11 // pred_region
          _
        $region52: #{transformer_rln_forward.1} parent=11 // pred_fallthru
          _
        // Predicated region
        $region53: #{transformer_rln_forward.1} parent=11 // pred_check
          %p420 = pneg %p307
        $region54: #{transformer_rln_forward.1} parent=11 // pred_check_branch
          %422 = sbr.rel (%p420) target = $region56
        $region55: #{transformer_rln_forward.1} parent=11 // pred_region
          _
        $region56: #{transformer_rln_forward.1} parent=11 // pred_fallthru
          _
        // Predicated region
        $region57: #{transformer_rln_forward.1} parent=11 // pred_check
          %p423 = pneg %p328
        $region58: #{transformer_rln_forward.1} parent=11 // pred_check_branch
          %425 = sbr.rel (%p423) target = $region60
        $region59: #{transformer_rln_forward.1} parent=11 // pred_region
          _
        $region60: #{transformer_rln_forward.1} parent=11 // pred_fallthru
          _
        // Predicated region
        $region61: #{transformer_rln_forward.1} parent=11 // pred_check
          %p426 = pneg %p349
        $region62: #{transformer_rln_forward.1} parent=11 // pred_check_branch
          %428 = sbr.rel (%p426) target = $region64
        $region63: #{transformer_rln_forward.1} parent=11 // pred_region
          _
        $region64: #{transformer_rln_forward.1} parent=11 // pred_fallthru
          _
      $region12: #{transformer_rln_forward.1} parent=5 // pred_fallthru
        _
      %p429 = scmp.lt.s32.totalorder %s24, 2
      // Predicated region
      $region65: #{transformer_rln_forward.1} parent=5 // pred_check
        %p430 = pneg %p429
      $region66: #{transformer_rln_forward.1} parent=5 // pred_check_branch
        %432 = sbr.rel (%p430) target = $region68
      $region67: #{transformer_rln_forward.1} parent=5 // pred_region
        // Predicated region
        $region69: #{transformer_rln_forward.1} parent=67 // pred_check
          %p433 = pneg %p44
        $region70: #{transformer_rln_forward.1} parent=67 // pred_check_branch
          %435 = sbr.rel (%p433) target = $region72
        $region71: #{transformer_rln_forward.1} parent=67 // pred_region
          %p436 = scmp.lt.s32.totalorder %s24, 1
          %s437 = scalar_select %p436, %s24, 1
          %s438 = smul.addr %s437, 8
          %s439 = scalar_lea.vmem %s0, %s438
        $region72: #{transformer_rln_forward.1} parent=67 // pred_fallthru
          _
        // Predicated region
        $region73: #{transformer_rln_forward.1} parent=67 // pred_check
          %p440 = pneg %p70
        $region74: #{transformer_rln_forward.1} parent=67 // pred_check_branch
          %442 = sbr.rel (%p440) target = $region76
        $region75: #{transformer_rln_forward.1} parent=67 // pred_region
          %p443 = scmp.lt.s32.totalorder %s24, 1
          %s444 = scalar_select %p443, %s24, 1
          %s445 = scalar_lea.vmem %s1, %s444
        $region76: #{transformer_rln_forward.1} parent=67 // pred_fallthru
          _
      $region68: #{transformer_rln_forward.1} parent=5 // pred_fallthru
        _
      %p446 = scmp.le.s32.totalorder 1, %s24
      %p447 = scmp.lt.s32.totalorder %s24, 3
      %p448 = pnand %p446, %p447
      %p449 = pneg %p448
      // Predicated region
      $region77: #{transformer_rln_forward.1} parent=5 // pred_check
        _
      $region78: #{transformer_rln_forward.1} parent=5 // pred_check_branch
        %451 = sbr.rel (%p448) target = $region80
      $region79: #{transformer_rln_forward.1} parent=5 // pred_region
        %s452 = ssub.s32 %s24, 1
        %p453 = scmp.lt.s32.totalorder %s29, 1
        %s454 = scalar_select %p453, %s29, 1
        %s455 = smul.addr %s454, 8
        %s456 = scalar_lea.vmem %s0, %s455
        %p457 = pneg %p50
        %p458 = pneg %p47
        %p459 = scmp.lt.s32.totalorder %s29, 1
        %s460 = scalar_select %p459, %s29, 1
        %s461 = scalar_lea.vmem %s1, %s460
        %p462 = pneg %p76
        %p463 = pneg %p73
        %p464 = pneg %p97
        %p465 = pneg %p94
        %p466 = pneg %p118
        %p467 = pneg %p115
        %p468 = pneg %p139
        %p469 = pneg %p136
        %p470 = pneg %p160
        %p471 = pneg %p157
        %p472 = pneg %p181
        %p473 = pneg %p178
        %p474 = pneg %p202
        %p475 = pneg %p199
        %p476 = pneg %p223
        %p477 = pneg %p220
        %p478 = pneg %p244
        %p479 = pneg %p241
        %p480 = pneg %p265
        %p481 = pneg %p262
        %p482 = pneg %p286
        %p483 = pneg %p283
        %p484 = pneg %p307
        %p485 = pneg %p304
        %p486 = pneg %p328
        %p487 = pneg %p325
        %p488 = pneg %p349
        %p489 = pneg %p346
        %p490 = pneg %p375
        %p491 = pneg %p372
        %s492 = sand.u32 %s362, 1
        %s493 = scalar_lea.sflag [#allocation3], %s492
        %s494 = sand.u32 %s362, 1
        %s495 = scalar_lea.vmem [#allocation2], %s494
        %p496 = scmp.lt.s32.totalorder %s29, 1
        %s497 = scalar_select %p496, %s29, 1
        %s498 = smul.addr %s497, 8
        %s499 = scalar_lea.vmem %s0, %s498
        %p500 = scmp.lt.s32.totalorder %s29, 1
        %s501 = scalar_select %p500, %s29, 1
        %s502 = scalar_lea.vmem %s1, %s501
        %v503 = vld [vmem:[%s499] sm:$0xff]
        %v504 = vld [vmem:[%s2] sm:$0x3]
        %vm505 = vcmask 261120
        %v506 = vsel %vm505, %v503, 0.0
        %507 = vadd.xlane.f32.xlu0 %v506
        %v508 = vpop.xlane.xlu0 %507
        %v509 = vrcp.pop 32.0
        %v510 = vmul.f32 32.0, %v509
        %v511 = vsub.f32 1.0, %v510
        %v512 = vmul.f32 %v509, %v511
        %v513 = vadd.f32 %v509, %v512
        %vm514 = vweird.f32 %v509
        %v515 = vsel %vm514, %v509, %v513
        %v516 = vmul.f32 %v508, %v515
        %v517 = vsub.f32 %v503, %v516
        %v518 = vmul.f32 %v517, %v517
        %v519 = vsel %vm505, %v518, 0.0
        %520 = vadd.xlane.f32.xlu0 %v519
        %v521 = vpop.xlane.xlu0 %520
        %v522 = vmul.f32 %v521, %v515
        %v523 = vadd.f32 %v522, 1e-12
        %v524 = vrsqrt.pop %v523
        %v525 = vmul.f32 %v524, %v523
        %v526 = vmul.f32 %v525, %v524
        %v527 = vmul.f32 0.5, %v526
        %v528 = vsub.f32 1.5, %v527
        %v529 = vmul.f32 %v524, %v528
        %vm530 = vweird.f32 %v523
        %vm531 = vweird.f32 %v524
        %vm532 = vmor %vm530, %vm531
        %v533 = vsel %vm532, %v524, %v529
        %v534 = vmul.f32 %v517, %v533
        %v535 = vperm.slane %v504, 0
        %v536 = vmul.f32 %v534, %v535
        %v537 = vperm.slane %v504, 1
        %v538 = vadd.f32 %v536, %v537
        %v539 = vld [vmem:[%s502] sm:$0x1]
        %v540 = vsub.f32 1.0, %v539
        %v541 = vmul.f32 %v540, -10000.0
        %v542 = vld [vmem:[%s3] sm:$0xff]
        %v543 = vld [vmem:[%s3 + $0x8] sm:$0xff]
        %v544 = vld [vmem:[%s3 + $0x10] sm:$0xff]
        %v545 = vld [vmem:[%s3 + $0x18] sm:$0xff]
        %v546 = vld [vmem:[%s4] sm:$0x1]
        %v548 = vperm.slane %v546, 0
        %v551 = vsel %vm505, %v538, 0
        %553 = vmatpush.msra.mxu0 0.0
        %554 = vmatpush.msra.mxu0 0.0
        %555 = vmatpush.msra.mxu0 0.0
        %556 = vmatpush.msra.mxu0 0.0
        %557 = vmatpush.msra.mxu0 0.0
        %558 = vmatpush.msra.mxu0 0.0
        %559 = vmatpush.msra.mxu0 0.0
        %560 = vmatpush.msra.mxu0 0.0
        %561 = vmatpush.msra.mxu0 0.0
        %562 = vmatpush.msra.mxu0 0.0
        %563 = vmatpush.msra.mxu0 0.0
        %564 = vmatpush.msra.mxu0 0.0
        %565 = vmatpush.msra.mxu0 %v545
        %566 = vmatpush.msra.mxu0 %v544
        %567 = vmatpush.msra.mxu0 %v543
        %568 = vmatpush.msra.mxu0 %v542
        %569 = vmatmul.f32.gmra.mxu0 %v551
        %v570 = vpop.f32.mrf.mxu0
        %v571 = vadd.f32 %v548, %v570
        %572 = vdwg.mxu0
        %v573 = vld [vmem:[%s6] sm:$0x1]
        %v575 = vperm.slane %v541, 0
        %578 = vrot.lane.b32.xlu0 %v571, 96
        %v579 = vpop.permute.xlu0 %578
        %vm580 = vcmask 130048
        %v581 = vsel %vm580, %v571, 0
        %v583 = vsel %vm580, %v579, 0
        %585 = vmatpush.xpose.msra.mxu0 0.0
        %586 = vmatpush.xpose.msra.mxu0 0.0
        %587 = vmatpush.xpose.msra.mxu0 0.0
        %588 = vmatpush.xpose.msra.mxu0 0.0
        %589 = vmatpush.xpose.msra.mxu0 0.0
        %590 = vmatpush.xpose.msra.mxu0 0.0
        %591 = vmatpush.xpose.msra.mxu0 0.0
        %592 = vmatpush.xpose.msra.mxu0 0.0
        %593 = vmatpush.xpose.msra.mxu0 0.0
        %594 = vmatpush.xpose.msra.mxu0 0.0
        %595 = vmatpush.xpose.msra.mxu0 0.0
        %596 = vmatpush.xpose.msra.mxu0 0.0
        %597 = vmatpush.xpose.msra.mxu0 0.0
        %598 = vmatpush.xpose.msra.mxu0 0.0
        %599 = vmatpush.xpose.msra.mxu0 0.0
        %600 = vmatpush.xpose.msra.mxu0 %v583
        %601 = vmatmul.f32.gmra.mxu0 %v581
        %v602 = vpop.f32.mrf.mxu0
        %v603 = vadd.f32 %v575, %v602
        %604 = vdwg.mxu0
        %vm605 = vcmask 64512
        %v606 = vsel %vm605, %v603, -inf
        %607 = vmax.xlane.f32.xlu0 %v606
        %v608 = vpop.xlane.xlu0 %607
        %v609 = vsub.f32 %v603, %v608
        %v610 = vmul.f32 %v609, 1.442695
        %v611 = vpow.pop %v610
        %v612 = vsel %vm605, %v611, 0.0
        %613 = vadd.xlane.f32.xlu0 %v612
        %v614 = vpop.xlane.xlu0 %613
        %v615 = vrcp.pop %v614
        %v616 = vmul.f32 %v611, %v615
        %617 = vrot.lane.b32.xlu0 %v571, 64
        %v618 = vpop.permute.xlu0 %617
        %v621 = vsel %vm605, %v616, 0
        %623 = vmatpush.msra.mxu0 0.0
        %624 = vmatpush.msra.mxu0 0.0
        %625 = vmatpush.msra.mxu0 0.0
        %626 = vmatpush.msra.mxu0 0.0
        %627 = vmatpush.msra.mxu0 0.0
        %628 = vmatpush.msra.mxu0 0.0
        %629 = vmatpush.msra.mxu0 0.0
        %630 = vmatpush.msra.mxu0 0.0
        %631 = vmatpush.msra.mxu0 0.0
        %632 = vmatpush.msra.mxu0 0.0
        %633 = vmatpush.msra.mxu0 0.0
        %634 = vmatpush.msra.mxu0 0.0
        %635 = vmatpush.msra.mxu0 0.0
        %636 = vmatpush.msra.mxu0 0.0
        %637 = vmatpush.msra.mxu0 0.0
        %638 = vmatpush.msra.mxu0 %v618
        %639 = vmatmul.f32.gmra.mxu0 %v621
        %v640 = vpop.f32.mrf.mxu0
        %v641 = vadd.f32 0.0, %v640
        %642 = vdwg.mxu0
        %v643 = vld [vmem:[%s5] sm:$0xff]
        %v644 = vld [vmem:[%s5 + $0x8] sm:$0xff]
        %v646 = vsel %vm580, %v641, 0
        %648 = vmatpush.msra.mxu0 0.0
        %649 = vmatpush.msra.mxu0 0.0
        %650 = vmatpush.msra.mxu0 0.0
        %651 = vmatpush.msra.mxu0 0.0
        %652 = vmatpush.msra.mxu0 0.0
        %653 = vmatpush.msra.mxu0 0.0
        %654 = vmatpush.msra.mxu0 0.0
        %655 = vmatpush.msra.mxu0 0.0
        %656 = vmatpush.msra.mxu0 0.0
        %657 = vmatpush.msra.mxu0 0.0
        %658 = vmatpush.msra.mxu0 0.0
        %659 = vmatpush.msra.mxu0 0.0
        %660 = vmatpush.msra.mxu0 0.0
        %661 = vmatpush.msra.mxu0 0.0
        %662 = vmatpush.msra.mxu0 %v644
        %663 = vmatpush.msra.mxu0 %v643
        %664 = vmatmul.f32.gmra.mxu0 %v646
        %v665 = vpop.f32.mrf.mxu0
        %v666 = vadd.f32 0.0, %v665
        %667 = vdwg.mxu0
        %v669 = vperm.slane %v573, 0
        %v671 = vadd.f32 %v669, %v666
        %672 = vrot.lane.b32.xlu0 %v571, 112
        %v673 = vpop.permute.xlu0 %672
        %674 = vrot.lane.b32.xlu0 %v571, 80
        %v675 = vpop.permute.xlu0 %674
        %v676 = vsel %vm580, %v673, 0
        %v678 = vsel %vm580, %v675, 0
        %680 = vmatpush.xpose.msra.mxu0 0.0
        %681 = vmatpush.xpose.msra.mxu0 0.0
        %682 = vmatpush.xpose.msra.mxu0 0.0
        %683 = vmatpush.xpose.msra.mxu0 0.0
        %684 = vmatpush.xpose.msra.mxu0 0.0
        %685 = vmatpush.xpose.msra.mxu0 0.0
        %686 = vmatpush.xpose.msra.mxu0 0.0
        %687 = vmatpush.xpose.msra.mxu0 0.0
        %688 = vmatpush.xpose.msra.mxu0 0.0
        %689 = vmatpush.xpose.msra.mxu0 0.0
        %690 = vmatpush.xpose.msra.mxu0 0.0
        %691 = vmatpush.xpose.msra.mxu0 0.0
        %692 = vmatpush.xpose.msra.mxu0 0.0
        %693 = vmatpush.xpose.msra.mxu0 0.0
        %694 = vmatpush.xpose.msra.mxu0 0.0
        %695 = vmatpush.xpose.msra.mxu0 %v678
        %696 = vmatmul.f32.gmra.mxu0 %v676
        %v697 = vpop.f32.mrf.mxu0
        %v698 = vadd.f32 %v575, %v697
        %699 = vdwg.mxu0
        %v700 = vsel %vm605, %v698, -inf
        %701 = vmax.xlane.f32.xlu0 %v700
        %v702 = vpop.xlane.xlu0 %701
        %v703 = vsub.f32 %v698, %v702
        %v704 = vmul.f32 %v703, 1.442695
        %v705 = vpow.pop %v704
        %v706 = vsel %vm605, %v705, 0.0
        %707 = vadd.xlane.f32.xlu0 %v706
        %v708 = vpop.xlane.xlu0 %707
        %v709 = vrcp.pop %v708
        %v710 = vmul.f32 %v705, %v709
        %711 = vrot.lane.b32.xlu0 %v571, 48
        %v712 = vpop.permute.xlu0 %711
        %v715 = vsel %vm605, %v710, 0
        %717 = vmatpush.msra.mxu0 0.0
        %718 = vmatpush.msra.mxu0 0.0
        %719 = vmatpush.msra.mxu0 0.0
        %720 = vmatpush.msra.mxu0 0.0
        %721 = vmatpush.msra.mxu0 0.0
        %722 = vmatpush.msra.mxu0 0.0
        %723 = vmatpush.msra.mxu0 0.0
        %724 = vmatpush.msra.mxu0 0.0
        %725 = vmatpush.msra.mxu0 0.0
        %726 = vmatpush.msra.mxu0 0.0
        %727 = vmatpush.msra.mxu0 0.0
        %728 = vmatpush.msra.mxu0 0.0
        %729 = vmatpush.msra.mxu0 0.0
        %730 = vmatpush.msra.mxu0 0.0
        %731 = vmatpush.msra.mxu0 0.0
        %732 = vmatpush.msra.mxu0 %v712
        %733 = vmatmul.f32.gmra.mxu0 %v715
        %v734 = vpop.f32.mrf.mxu0
        %v735 = vadd.f32 0.0, %v734
        %736 = vdwg.mxu0
        %s737 = scalar_lea.vmem %s5, 16
        %v738 = vld [vmem:[%s737] sm:$0xff]
        %v739 = vld [vmem:[%s737 + $0x8] sm:$0xff]
        %v741 = vsel %vm580, %v735, 0
        %743 = vmatpush.msra.mxu0 0.0
        %744 = vmatpush.msra.mxu0 0.0
        %745 = vmatpush.msra.mxu0 0.0
        %746 = vmatpush.msra.mxu0 0.0
        %747 = vmatpush.msra.mxu0 0.0
        %748 = vmatpush.msra.mxu0 0.0
        %749 = vmatpush.msra.mxu0 0.0
        %750 = vmatpush.msra.mxu0 0.0
        %751 = vmatpush.msra.mxu0 0.0
        %752 = vmatpush.msra.mxu0 0.0
        %753 = vmatpush.msra.mxu0 0.0
        %754 = vmatpush.msra.mxu0 0.0
        %755 = vmatpush.msra.mxu0 0.0
        %756 = vmatpush.msra.mxu0 0.0
        %757 = vmatpush.msra.mxu0 %v739
        %758 = vmatpush.msra.mxu0 %v738
        %759 = vmatmul.f32.gmra.mxu0 %v741
        %v760 = vpop.f32.mrf.mxu0
        %v761 = vadd.f32 0.0, %v760
        %762 = vdwg.mxu0
        %v763 = vadd.f32 %v671, %v761
        %v764 = vadd.f32 %v763, %v538
        %v765 = vld [vmem:[%s7] sm:$0x3]
        %v766 = vsel %vm505, %v764, 0.0
        %767 = vadd.xlane.f32.xlu0 %v766
        %v768 = vpop.xlane.xlu0 %767
        %v769 = vmul.f32 %v768, %v515
        %v770 = vsub.f32 %v764, %v769
        %v771 = vmul.f32 %v770, %v770
        %v772 = vsel %vm505, %v771, 0.0
        %773 = vadd.xlane.f32.xlu0 %v772
        %v774 = vpop.xlane.xlu0 %773
        %v775 = vmul.f32 %v774, %v515
        %v776 = vadd.f32 %v775, 1e-12
        %v777 = vrsqrt.pop %v776
        %v778 = vmul.f32 %v777, %v776
        %v779 = vmul.f32 %v778, %v777
        %v780 = vmul.f32 0.5, %v779
        %v781 = vsub.f32 1.5, %v780
        %v782 = vmul.f32 %v777, %v781
        %vm783 = vweird.f32 %v776
        %vm784 = vweird.f32 %v777
        %vm785 = vmor %vm783, %vm784
        %v786 = vsel %vm785, %v777, %v782
        %v787 = vmul.f32 %v770, %v786
        %v788 = vperm.slane %v765, 0
        %v789 = vmul.f32 %v787, %v788
        %v790 = vperm.slane %v765, 1
        %v791 = vadd.f32 %v789, %v790
        %v792 = vld [vmem:[%s8] sm:$0xff]
        %v793 = vld [vmem:[%s8 + $0x8] sm:$0xff]
        %v794 = vld [vmem:[%s8 + $0x10] sm:$0xff]
        %v795 = vld [vmem:[%s8 + $0x18] sm:$0xff]
        %v796 = vld [vmem:[%s9] sm:$0x1]
        %v798 = vperm.slane %v796, 0
        %v801 = vsel %vm505, %v791, 0
        %803 = vmatpush.msra.mxu0 0.0
        %804 = vmatpush.msra.mxu0 0.0
        %805 = vmatpush.msra.mxu0 0.0
        %806 = vmatpush.msra.mxu0 0.0
        %807 = vmatpush.msra.mxu0 0.0
        %808 = vmatpush.msra.mxu0 0.0
        %809 = vmatpush.msra.mxu0 0.0
        %810 = vmatpush.msra.mxu0 0.0
        %811 = vmatpush.msra.mxu0 0.0
        %812 = vmatpush.msra.mxu0 0.0
        %813 = vmatpush.msra.mxu0 0.0
        %814 = vmatpush.msra.mxu0 0.0
        %815 = vmatpush.msra.mxu0 %v795
        %816 = vmatpush.msra.mxu0 %v794
        %817 = vmatpush.msra.mxu0 %v793
        %818 = vmatpush.msra.mxu0 %v792
        %819 = vmatmul.f32.gmra.mxu0 %v801
        %v820 = vpop.f32.mrf.mxu0
        %v821 = vadd.f32 %v798, %v820
        %822 = vdwg.mxu0
        %v823 = vmul.f32 %v821, 0.5
        %v824 = vmul.f32 %v821, 0.044715
        %v825 = vmul.f32 %v824, %v821
        %v826 = vmul.f32 %v825, %v821
        %v827 = vadd.f32 %v821, %v826
        %v828 = vmul.f32 %v827, 0.7978846
        %v829 = vtanh.pop %v828
        %v830 = vadd.f32 %v829, 1.0
        %v831 = vmul.f32 %v823, %v830
        %v832 = vld [vmem:[%s10] sm:$0xff]
        %v833 = vld [vmem:[%s10 + $0x8] sm:$0xff]
        %v834 = vld [vmem:[%s10 + $0x10] sm:$0xff]
        %v835 = vld [vmem:[%s10 + $0x18] sm:$0xff]
        %v836 = vld [vmem:[%s10 + $0x20] sm:$0xff]
        %v837 = vld [vmem:[%s10 + $0x28] sm:$0xff]
        %v838 = vld [vmem:[%s10 + $0x30] sm:$0xff]
        %v839 = vld [vmem:[%s10 + $0x38] sm:$0xff]
        %v840 = vld [vmem:[%s11] sm:$0x1]
        %v842 = vperm.slane %v840, 0
        %vm844 = vcmask 523264
        %v846 = vsel %vm844, %v831, 0
        %848 = vmatpush.msra.mxu0 0.0
        %849 = vmatpush.msra.mxu0 0.0
        %850 = vmatpush.msra.mxu0 0.0
        %851 = vmatpush.msra.mxu0 0.0
        %852 = vmatpush.msra.mxu0 0.0
        %853 = vmatpush.msra.mxu0 0.0
        %854 = vmatpush.msra.mxu0 0.0
        %855 = vmatpush.msra.mxu0 0.0
        %856 = vmatpush.msra.mxu0 %v839
        %857 = vmatpush.msra.mxu0 %v838
        %858 = vmatpush.msra.mxu0 %v837
        %859 = vmatpush.msra.mxu0 %v836
        %860 = vmatpush.msra.mxu0 %v835
        %861 = vmatpush.msra.mxu0 %v834
        %862 = vmatpush.msra.mxu0 %v833
        %863 = vmatpush.msra.mxu0 %v832
        %864 = vmatmul.f32.gmra.mxu0 %v846
        %v865 = vpop.f32.mrf.mxu0
        %v866 = vadd.f32 %v842, %v865
        %867 = vdwg.mxu0
        %v868 = vadd.f32 %v866, %v791
        %v869 = vld [vmem:[%s12] sm:$0x3]
        %v870 = vsel %vm505, %v868, 0.0
        %871 = vadd.xlane.f32.xlu0 %v870
        %v872 = vpop.xlane.xlu0 %871
        %v873 = vmul.f32 %v872, %v515
        %v874 = vsub.f32 %v868, %v873
        %v875 = vmul.f32 %v874, %v874
        %v876 = vsel %vm505, %v875, 0.0
        %877 = vadd.xlane.f32.xlu0 %v876
        %v878 = vpop.xlane.xlu0 %877
        %v879 = vmul.f32 %v878, %v515
        %v880 = vadd.f32 %v879, 1e-12
        %v881 = vrsqrt.pop %v880
        %v882 = vmul.f32 %v881, %v880
        %v883 = vmul.f32 %v882, %v881
        %v884 = vmul.f32 0.5, %v883
        %v885 = vsub.f32 1.5, %v884
        %v886 = vmul.f32 %v881, %v885
        %vm887 = vweird.f32 %v880
        %vm888 = vweird.f32 %v881
        %vm889 = vmor %vm887, %vm888
        %v890 = vsel %vm889, %v881, %v886
        %v891 = vmul.f32 %v874, %v890
        %v892 = vperm.slane %v869, 0
        %v893 = vmul.f32 %v891, %v892
        %v894 = vperm.slane %v869, 1
        %v895 = vadd.f32 %v893, %v894
        %s896 = scalar_lea.vmem %s3, 32
        %v897 = vld [vmem:[%s896] sm:$0xff]
        %v898 = vld [vmem:[%s896 + $0x8] sm:$0xff]
        %v899 = vld [vmem:[%s896 + $0x10] sm:$0xff]
        %v900 = vld [vmem:[%s896 + $0x18] sm:$0xff]
        %s901 = scalar_lea.vmem %s4, 1
        %v902 = vld [vmem:[%s901] sm:$0x1]
        %v904 = vperm.slane %v902, 0
        %v907 = vsel %vm505, %v895, 0
        %909 = vmatpush.msra.mxu0 0.0
        %910 = vmatpush.msra.mxu0 0.0
        %911 = vmatpush.msra.mxu0 0.0
        %912 = vmatpush.msra.mxu0 0.0
        %913 = vmatpush.msra.mxu0 0.0
        %914 = vmatpush.msra.mxu0 0.0
        %915 = vmatpush.msra.mxu0 0.0
        %916 = vmatpush.msra.mxu0 0.0
        %917 = vmatpush.msra.mxu0 0.0
        %918 = vmatpush.msra.mxu0 0.0
        %919 = vmatpush.msra.mxu0 0.0
        %920 = vmatpush.msra.mxu0 0.0
        %921 = vmatpush.msra.mxu0 %v900
        %922 = vmatpush.msra.mxu0 %v899
        %923 = vmatpush.msra.mxu0 %v898
        %924 = vmatpush.msra.mxu0 %v897
        %925 = vmatmul.f32.gmra.mxu0 %v907
        %v926 = vpop.f32.mrf.mxu0
        %v927 = vadd.f32 %v904, %v926
        %928 = vdwg.mxu0
        %s929 = scalar_lea.vmem %s6, 1
        %v930 = vld [vmem:[%s929] sm:$0x1]
        %932 = vrot.lane.b32.xlu0 %v927, 96
        %v933 = vpop.permute.xlu0 %932
        %v934 = vsel %vm580, %v927, 0
        %v936 = vsel %vm580, %v933, 0
        %938 = vmatpush.xpose.msra.mxu0 0.0
        %939 = vmatpush.xpose.msra.mxu0 0.0
        %940 = vmatpush.xpose.msra.mxu0 0.0
        %941 = vmatpush.xpose.msra.mxu0 0.0
        %942 = vmatpush.xpose.msra.mxu0 0.0
        %943 = vmatpush.xpose.msra.mxu0 0.0
        %944 = vmatpush.xpose.msra.mxu0 0.0
        %945 = vmatpush.xpose.msra.mxu0 0.0
        %946 = vmatpush.xpose.msra.mxu0 0.0
        %947 = vmatpush.xpose.msra.mxu0 0.0
        %948 = vmatpush.xpose.msra.mxu0 0.0
        %949 = vmatpush.xpose.msra.mxu0 0.0
        %950 = vmatpush.xpose.msra.mxu0 0.0
        %951 = vmatpush.xpose.msra.mxu0 0.0
        %952 = vmatpush.xpose.msra.mxu0 0.0
        %953 = vmatpush.xpose.msra.mxu0 %v936
        %954 = vmatmul.f32.gmra.mxu0 %v934
        %v955 = vpop.f32.mrf.mxu0
        %v956 = vadd.f32 %v575, %v955
        %957 = vdwg.mxu0
        %v958 = vsel %vm605, %v956, -inf
        %959 = vmax.xlane.f32.xlu0 %v958
        %v960 = vpop.xlane.xlu0 %959
        %v961 = vsub.f32 %v956, %v960
        %v962 = vmul.f32 %v961, 1.442695
        %v963 = vpow.pop %v962
        %v964 = vsel %vm605, %v963, 0.0
        %965 = vadd.xlane.f32.xlu0 %v964
        %v966 = vpop.xlane.xlu0 %965
        %v967 = vrcp.pop %v966
        %v968 = vmul.f32 %v963, %v967
        %969 = vrot.lane.b32.xlu0 %v927, 64
        %v970 = vpop.permute.xlu0 %969
        %v973 = vsel %vm605, %v968, 0
        %975 = vmatpush.msra.mxu0 0.0
        %976 = vmatpush.msra.mxu0 0.0
        %977 = vmatpush.msra.mxu0 0.0
        %978 = vmatpush.msra.mxu0 0.0
        %979 = vmatpush.msra.mxu0 0.0
        %980 = vmatpush.msra.mxu0 0.0
        %981 = vmatpush.msra.mxu0 0.0
        %982 = vmatpush.msra.mxu0 0.0
        %983 = vmatpush.msra.mxu0 0.0
        %984 = vmatpush.msra.mxu0 0.0
        %985 = vmatpush.msra.mxu0 0.0
        %986 = vmatpush.msra.mxu0 0.0
        %987 = vmatpush.msra.mxu0 0.0
        %988 = vmatpush.msra.mxu0 0.0
        %989 = vmatpush.msra.mxu0 0.0
        %990 = vmatpush.msra.mxu0 %v970
        %991 = vmatmul.f32.gmra.mxu0 %v973
        %v992 = vpop.f32.mrf.mxu0
        %v993 = vadd.f32 0.0, %v992
        %994 = vdwg.mxu0
        %s995 = scalar_lea.vmem %s5, 32
        %v996 = vld [vmem:[%s995] sm:$0xff]
        %v997 = vld [vmem:[%s995 + $0x8] sm:$0xff]
        %v999 = vsel %vm580, %v993, 0
        %1001 = vmatpush.msra.mxu0 0.0
        %1002 = vmatpush.msra.mxu0 0.0
        %1003 = vmatpush.msra.mxu0 0.0
        %1004 = vmatpush.msra.mxu0 0.0
        %1005 = vmatpush.msra.mxu0 0.0
        %1006 = vmatpush.msra.mxu0 0.0
        %1007 = vmatpush.msra.mxu0 0.0
        %1008 = vmatpush.msra.mxu0 0.0
        %1009 = vmatpush.msra.mxu0 0.0
        %1010 = vmatpush.msra.mxu0 0.0
        %1011 = vmatpush.msra.mxu0 0.0
        %1012 = vmatpush.msra.mxu0 0.0
        %1013 = vmatpush.msra.mxu0 0.0
        %1014 = vmatpush.msra.mxu0 0.0
        %1015 = vmatpush.msra.mxu0 %v997
        %1016 = vmatpush.msra.mxu0 %v996
        %1017 = vmatmul.f32.gmra.mxu0 %v999
        %v1018 = vpop.f32.mrf.mxu0
        %v1019 = vadd.f32 0.0, %v1018
        %1020 = vdwg.mxu0
        %v1022 = vperm.slane %v930, 0
        %v1024 = vadd.f32 %v1022, %v1019
        %1025 = vrot.lane.b32.xlu0 %v927, 112
        %v1026 = vpop.permute.xlu0 %1025
        %1027 = vrot.lane.b32.xlu0 %v927, 80
        %v1028 = vpop.permute.xlu0 %1027
        %v1029 = vsel %vm580, %v1026, 0
        %v1031 = vsel %vm580, %v1028, 0
        %1033 = vmatpush.xpose.msra.mxu0 0.0
        %1034 = vmatpush.xpose.msra.mxu0 0.0
        %1035 = vmatpush.xpose.msra.mxu0 0.0
        %1036 = vmatpush.xpose.msra.mxu0 0.0
        %1037 = vmatpush.xpose.msra.mxu0 0.0
        %1038 = vmatpush.xpose.msra.mxu0 0.0
        %1039 = vmatpush.xpose.msra.mxu0 0.0
        %1040 = vmatpush.xpose.msra.mxu0 0.0
        %1041 = vmatpush.xpose.msra.mxu0 0.0
        %1042 = vmatpush.xpose.msra.mxu0 0.0
        %1043 = vmatpush.xpose.msra.mxu0 0.0
        %1044 = vmatpush.xpose.msra.mxu0 0.0
        %1045 = vmatpush.xpose.msra.mxu0 0.0
        %1046 = vmatpush.xpose.msra.mxu0 0.0
        %1047 = vmatpush.xpose.msra.mxu0 0.0
        %1048 = vmatpush.xpose.msra.mxu0 %v1031
        %1049 = vmatmul.f32.gmra.mxu0 %v1029
        %v1050 = vpop.f32.mrf.mxu0
        %v1051 = vadd.f32 %v575, %v1050
        %1052 = vdwg.mxu0
        %v1053 = vsel %vm605, %v1051, -inf
        %1054 = vmax.xlane.f32.xlu0 %v1053
        %v1055 = vpop.xlane.xlu0 %1054
        %v1056 = vsub.f32 %v1051, %v1055
        %v1057 = vmul.f32 %v1056, 1.442695
        %v1058 = vpow.pop %v1057
        %v1059 = vsel %vm605, %v1058, 0.0
        %1060 = vadd.xlane.f32.xlu0 %v1059
        %v1061 = vpop.xlane.xlu0 %1060
        %v1062 = vrcp.pop %v1061
        %v1063 = vmul.f32 %v1058, %v1062
        %1064 = vrot.lane.b32.xlu0 %v927, 48
        %v1065 = vpop.permute.xlu0 %1064
        %v1068 = vsel %vm605, %v1063, 0
        %1070 = vmatpush.msra.mxu0 0.0
        %1071 = vmatpush.msra.mxu0 0.0
        %1072 = vmatpush.msra.mxu0 0.0
        %1073 = vmatpush.msra.mxu0 0.0
        %1074 = vmatpush.msra.mxu0 0.0
        %1075 = vmatpush.msra.mxu0 0.0
        %1076 = vmatpush.msra.mxu0 0.0
        %1077 = vmatpush.msra.mxu0 0.0
        %1078 = vmatpush.msra.mxu0 0.0
        %1079 = vmatpush.msra.mxu0 0.0
        %1080 = vmatpush.msra.mxu0 0.0
        %1081 = vmatpush.msra.mxu0 0.0
        %1082 = vmatpush.msra.mxu0 0.0
        %1083 = vmatpush.msra.mxu0 0.0
        %1084 = vmatpush.msra.mxu0 0.0
        %1085 = vmatpush.msra.mxu0 %v1065
        %1086 = vmatmul.f32.gmra.mxu0 %v1068
        %v1087 = vpop.f32.mrf.mxu0
        %v1088 = vadd.f32 0.0, %v1087
        %1089 = vdwg.mxu0
        %s1090 = scalar_lea.vmem %s5, 48
        %v1091 = vld [vmem:[%s1090] sm:$0xff]
        %v1092 = vld [vmem:[%s1090 + $0x8] sm:$0xff]
        %v1094 = vsel %vm580, %v1088, 0
        %1096 = vmatpush.msra.mxu0 0.0
        %1097 = vmatpush.msra.mxu0 0.0
        %1098 = vmatpush.msra.mxu0 0.0
        %1099 = vmatpush.msra.mxu0 0.0
        %1100 = vmatpush.msra.mxu0 0.0
        %1101 = vmatpush.msra.mxu0 0.0
        %1102 = vmatpush.msra.mxu0 0.0
        %1103 = vmatpush.msra.mxu0 0.0
        %1104 = vmatpush.msra.mxu0 0.0
        %1105 = vmatpush.msra.mxu0 0.0
        %1106 = vmatpush.msra.mxu0 0.0
        %1107 = vmatpush.msra.mxu0 0.0
        %1108 = vmatpush.msra.mxu0 0.0
        %1109 = vmatpush.msra.mxu0 0.0
        %1110 = vmatpush.msra.mxu0 %v1092
        %1111 = vmatpush.msra.mxu0 %v1091
        %1112 = vmatmul.f32.gmra.mxu0 %v1094
        %v1113 = vpop.f32.mrf.mxu0
        %v1114 = vadd.f32 0.0, %v1113
        %1115 = vdwg.mxu0
        %v1116 = vadd.f32 %v1024, %v1114
        %v1117 = vadd.f32 %v1116, %v895
        %s1118 = scalar_lea.vmem %s7, 2
        %v1119 = vld [vmem:[%s1118] sm:$0x3]
        %v1120 = vsel %vm505, %v1117, 0.0
        %1121 = vadd.xlane.f32.xlu0 %v1120
        %v1122 = vpop.xlane.xlu0 %1121
        %v1123 = vmul.f32 %v1122, %v515
        %v1124 = vsub.f32 %v1117, %v1123
        %v1125 = vmul.f32 %v1124, %v1124
        %v1126 = vsel %vm505, %v1125, 0.0
        %1127 = vadd.xlane.f32.xlu0 %v1126
        %v1128 = vpop.xlane.xlu0 %1127
        %v1129 = vmul.f32 %v1128, %v515
        %v1130 = vadd.f32 %v1129, 1e-12
        %v1131 = vrsqrt.pop %v1130
        %v1132 = vmul.f32 %v1131, %v1130
        %v1133 = vmul.f32 %v1132, %v1131
        %v1134 = vmul.f32 0.5, %v1133
        %v1135 = vsub.f32 1.5, %v1134
        %v1136 = vmul.f32 %v1131, %v1135
        %vm1137 = vweird.f32 %v1130
        %vm1138 = vweird.f32 %v1131
        %vm1139 = vmor %vm1137, %vm1138
        %v1140 = vsel %vm1139, %v1131, %v1136
        %v1141 = vmul.f32 %v1124, %v1140
        %v1142 = vperm.slane %v1119, 0
        %v1143 = vmul.f32 %v1141, %v1142
        %v1144 = vperm.slane %v1119, 1
        %v1145 = vadd.f32 %v1143, %v1144
        %s1146 = scalar_lea.vmem %s8, 32
        %v1147 = vld [vmem:[%s1146] sm:$0xff]
        %v1148 = vld [vmem:[%s1146 + $0x8] sm:$0xff]
        %v1149 = vld [vmem:[%s1146 + $0x10] sm:$0xff]
        %v1150 = vld [vmem:[%s1146 + $0x18] sm:$0xff]
        %s1151 = scalar_lea.vmem %s9, 1
        %v1152 = vld [vmem:[%s1151] sm:$0x1]
        %v1154 = vperm.slane %v1152, 0
        %v1157 = vsel %vm505, %v1145, 0
        %1159 = vmatpush.msra.mxu0 0.0
        %1160 = vmatpush.msra.mxu0 0.0
        %1161 = vmatpush.msra.mxu0 0.0
        %1162 = vmatpush.msra.mxu0 0.0
        %1163 = vmatpush.msra.mxu0 0.0
        %1164 = vmatpush.msra.mxu0 0.0
        %1165 = vmatpush.msra.mxu0 0.0
        %1166 = vmatpush.msra.mxu0 0.0
        %1167 = vmatpush.msra.mxu0 0.0
        %1168 = vmatpush.msra.mxu0 0.0
        %1169 = vmatpush.msra.mxu0 0.0
        %1170 = vmatpush.msra.mxu0 0.0
        %1171 = vmatpush.msra.mxu0 %v1150
        %1172 = vmatpush.msra.mxu0 %v1149
        %1173 = vmatpush.msra.mxu0 %v1148
        %1174 = vmatpush.msra.mxu0 %v1147
        %1175 = vmatmul.f32.gmra.mxu0 %v1157
        %v1176 = vpop.f32.mrf.mxu0
        %v1177 = vadd.f32 %v1154, %v1176
        %1178 = vdwg.mxu0
        %v1179 = vmul.f32 %v1177, 0.5
        %v1180 = vmul.f32 %v1177, 0.044715
        %v1181 = vmul.f32 %v1180, %v1177
        %v1182 = vmul.f32 %v1181, %v1177
        %v1183 = vadd.f32 %v1177, %v1182
        %v1184 = vmul.f32 %v1183, 0.7978846
        %v1185 = vtanh.pop %v1184
        %v1186 = vadd.f32 %v1185, 1.0
        %v1187 = vmul.f32 %v1179, %v1186
        %s1188 = scalar_lea.vmem %s10, 64
        %v1189 = vld [vmem:[%s1188] sm:$0xff]
        %v1190 = vld [vmem:[%s1188 + $0x8] sm:$0xff]
        %v1191 = vld [vmem:[%s1188 + $0x10] sm:$0xff]
        %v1192 = vld [vmem:[%s1188 + $0x18] sm:$0xff]
        %v1193 = vld [vmem:[%s1188 + $0x20] sm:$0xff]
        %v1194 = vld [vmem:[%s1188 + $0x28] sm:$0xff]
        %v1195 = vld [vmem:[%s1188 + $0x30] sm:$0xff]
        %v1196 = vld [vmem:[%s1188 + $0x38] sm:$0xff]
        %s1197 = scalar_lea.vmem %s11, 1
        %v1198 = vld [vmem:[%s1197] sm:$0x1]
        %v1200 = vperm.slane %v1198, 0
        %v1203 = vsel %vm844, %v1187, 0
        %1205 = vmatpush.msra.mxu0 0.0
        %1206 = vmatpush.msra.mxu0 0.0
        %1207 = vmatpush.msra.mxu0 0.0
        %1208 = vmatpush.msra.mxu0 0.0
        %1209 = vmatpush.msra.mxu0 0.0
        %1210 = vmatpush.msra.mxu0 0.0
        %1211 = vmatpush.msra.mxu0 0.0
        %1212 = vmatpush.msra.mxu0 0.0
        %1213 = vmatpush.msra.mxu0 %v1196
        %1214 = vmatpush.msra.mxu0 %v1195
        %1215 = vmatpush.msra.mxu0 %v1194
        %1216 = vmatpush.msra.mxu0 %v1193
        %1217 = vmatpush.msra.mxu0 %v1192
        %1218 = vmatpush.msra.mxu0 %v1191
        %1219 = vmatpush.msra.mxu0 %v1190
        %1220 = vmatpush.msra.mxu0 %v1189
        %1221 = vmatmul.f32.gmra.mxu0 %v1203
        %v1222 = vpop.f32.mrf.mxu0
        %v1223 = vadd.f32 %v1200, %v1222
        %1224 = vdwg.mxu0
        %v1225 = vadd.f32 %v1223, %v1145
        %s1226 = scalar_lea.vmem %s12, 2
        %v1227 = vld [vmem:[%s1226] sm:$0x3]
        %v1228 = vsel %vm505, %v1225, 0.0
        %1229 = vadd.xlane.f32.xlu0 %v1228
        %v1230 = vpop.xlane.xlu0 %1229
        %v1231 = vmul.f32 %v1230, %v515
        %v1232 = vsub.f32 %v1225, %v1231
        %v1233 = vmul.f32 %v1232, %v1232
        %v1234 = vsel %vm505, %v1233, 0.0
        %1235 = vadd.xlane.f32.xlu0 %v1234
        %v1236 = vpop.xlane.xlu0 %1235
        %v1237 = vmul.f32 %v1236, %v515
        %v1238 = vadd.f32 %v1237, 1e-12
        %v1239 = vrsqrt.pop %v1238
        %v1240 = vmul.f32 %v1239, %v1238
        %v1241 = vmul.f32 %v1240, %v1239
        %v1242 = vmul.f32 0.5, %v1241
        %v1243 = vsub.f32 1.5, %v1242
        %v1244 = vmul.f32 %v1239, %v1243
        %vm1245 = vweird.f32 %v1238
        %vm1246 = vweird.f32 %v1239
        %vm1247 = vmor %vm1245, %vm1246
        %v1248 = vsel %vm1247, %v1239, %v1244
        %v1249 = vmul.f32 %v1232, %v1248
        %v1250 = vperm.slane %v1227, 0
        %v1251 = vmul.f32 %v1249, %v1250
        %v1252 = vperm.slane %v1227, 1
        %v1253 = vadd.f32 %v1251, %v1252
        %v1254 = vld [vmem:[%s13] sm:$0xff]
        %v1255 = vld [vmem:[%s13 + $0x8] sm:$0xff]
        %v1256 = vld [vmem:[%s13 + $0x10] sm:$0xff]
        %v1257 = vld [vmem:[%s13 + $0x18] sm:$0xff]
        %v1258 = vld [vmem:[%s14] sm:$0x1]
        %v1260 = vsel %vm505, %v1253, 0
        %1262 = vmatpush.msra.mxu0 0.0
        %1263 = vmatpush.msra.mxu0 0.0
        %1264 = vmatpush.msra.mxu0 0.0
        %1265 = vmatpush.msra.mxu0 0.0
        %1266 = vmatpush.msra.mxu0 0.0
        %1267 = vmatpush.msra.mxu0 0.0
        %1268 = vmatpush.msra.mxu0 0.0
        %1269 = vmatpush.msra.mxu0 0.0
        %1270 = vmatpush.msra.mxu0 0.0
        %1271 = vmatpush.msra.mxu0 0.0
        %1272 = vmatpush.msra.mxu0 0.0
        %1273 = vmatpush.msra.mxu0 0.0
        %1274 = vmatpush.msra.mxu0 %v1257
        %1275 = vmatpush.msra.mxu0 %v1256
        %1276 = vmatpush.msra.mxu0 %v1255
        %1277 = vmatpush.msra.mxu0 %v1254
        %1278 = vmatmul.f32.gmra.mxu0 %v1260
        %v1279 = vpop.f32.mrf.mxu0
        %v1280 = vadd.f32 %v1258, %v1279
        %1281 = vdwg.mxu0
        %v1282 = vtanh.pop %v1280
        %vm1283 = vcmask 253952
        %1284 = vst.msk [vmem:[%s495] sm:$0x1] %vm1283, %v1282
        %s1285 = sand.u32 %s362, 1
        %s1286 = scalar_lea.sflag [#allocation3], %s1285
        %s1287 = sand.u32 %s362, 1
        %s1288 = scalar_lea.vmem [#allocation2], %s1287
        // Predicated region
        $region81: #{transformer_rln_forward.1} parent=79 // pred_check
          %p1289 = pneg %p372
        $region82: #{transformer_rln_forward.1} parent=79 // pred_check_branch
          %1291 = sbr.rel (%p1289) target = $region84
        $region83: #{transformer_rln_forward.1} parent=79 // pred_region
          %1293 = vsyncadd %s1286, 0
          %s1294 = scalar_lea.hbm %s15, %s29
          %s1296 = sshll.u32 %s1288, 4
          %s1297 = int_to_ptr.vmem [resolvable:$true] %s1296
          %s1298 = sshll.u32 %s1294, 4
          %s1299 = int_to_ptr.hbm [resolvable:$true] %s1298
          %1301 = dma.vmem_to_hbm [thread:$0]  %s1297, 16, %s1299, %s1286
        $region84: #{transformer_rln_forward.1} parent=79 // pred_fallthru
          _
      $region80: #{transformer_rln_forward.1} parent=5 // pred_fallthru
        _
      %p1302 = scmp.le.s32.totalorder 2, %s24
      // Predicated region
      $region85: #{transformer_rln_forward.1} parent=5 // pred_check
        %p1303 = pneg %p1302
      $region86: #{transformer_rln_forward.1} parent=5 // pred_check_branch
        %1305 = sbr.rel (%p1303) target = $region88
      $region87: #{transformer_rln_forward.1} parent=5 // pred_region
        %s1306 = ssub.s32 %s24, 2
        // Predicated region
        $region89: #{transformer_rln_forward.1} parent=87 // pred_check
          %p1307 = pneg %p378
        $region90: #{transformer_rln_forward.1} parent=87 // pred_check_branch
          %1309 = sbr.rel (%p1307) target = $region92
        $region91: #{transformer_rln_forward.1} parent=87 // pred_region
          %s1310 = sand.u32 %s363, 1
          %s1311 = scalar_lea.sflag [#allocation3], %s1310
          %s1312 = sand.u32 %s363, 1
          %s1313 = scalar_lea.vmem [#allocation2], %s1312
          %1315 = dma.done %s1311, 16
        $region92: #{transformer_rln_forward.1} parent=87 // pred_fallthru
          _
      $region88: #{transformer_rln_forward.1} parent=5 // pred_fallthru
        _
    $region6: #{transformer_rln_forward.1} parent=1 // loop_footer
      %s28 = sadd.s32 1, %s24
    $region7: #{transformer_rln_forward.1} parent=1 // loop_footer_branch
      %23 = sbr.rel target = $region3
    $region8: #{transformer_rln_forward.1} parent=1 // loop_exit
      _
    %1316 = vsyncpa [#allocation3], 1
    %s1317 = scalar_lea.sflag [#allocation3], 1
    %1318 = vsyncpa %s1317, 1

</llo_original>
